<compile_context>
chip_gen: v7x
topology: tpu7x:2x2x1
jax: 0.10.0
libtpu: 0.0.40
codegen_flags: <defaults>
</compile_context>

<pallas_src>
import jax
import jax.numpy as jnp
from jax.experimental import pallas as pl
from jax.experimental.pallas import tpu as pltpu

# ---- static module config (from LiXiaoning.__init__) ----
C_IN = 3
C_OUT = 6
KH = KW = 3
STRIDE = 1
PAD = 0

_LANE = 128
# target for the *double-buffered* (input block + output block) working set per grid step
_VMEM_STEP_TARGET = 12 * 1024 * 1024


def _round_up(x, m):
    return -(-x // m) * m


def _pick_batch_block(n, lanes):
    """Choose the batch-block size nb and the padded batch n_pad."""
    bytes_per_image = (C_IN + C_OUT) * lanes * 4          # one copy of in+out slabs
    nb = max(1, _VMEM_STEP_TARGET // (2 * bytes_per_image))  # 2x: pipeline double-buffers
    if nb >= n:
        return n, n                                        # whole batch in one step
    nb = max(8, (nb // 8) * 8)                             # sublane-aligned block
    return nb, _round_up(n, nb)


def _make_conv_kernel(img_w):
    """Kernel body, closed over the (static) image width used for tap offsets."""

    def kernel(w_ref, b_ref, x_ref, o_ref):
        # w_ref: SMEM (C_OUT*C_IN*KH*KW,) f32   flattened OIHW weights
        # b_ref: SMEM (C_OUT,)            f32
        # x_ref: VMEM (C_IN, Nb, L)       f32   L = round_up(H*W, 128), zero padded
        # o_ref: VMEM (C_OUT, Nb, L)      f32   full-lattice output (cropped in wrapper)
        nb = x_ref.shape[1]
        lanes = x_ref.shape[2]

        # Per-channel lane-dense slabs; leading-dim indexing => no relayout, loaded once.
        xs = [x_ref[c] for c in range(C_IN)]

        # Fold bias into the accumulator init (SMEM scalar broadcast on the VPU).
        accs = [jnp.full((nb, lanes), b_ref[oc], dtype=jnp.float32)
                for oc in range(C_OUT)]

        # 3x3 taps: one XLU lane-roll per (tap, channel); each rolled slab is immediately
        # reused by all 6 output channels as scalar-broadcast FMAs on the VPU.  Valid output
        # positions (col < OW, row < OH) never read wrapped/padded lanes, so the wraparound
        # garbage only lands in lattice positions the wrapper crops away.
        for kh in range(KH):
            for kw in range(KW):
                off = kh * img_w + kw
                shift = (lanes - off) % lanes       # rolled[p] == x_flat[p + off]
                for c in range(C_IN):
                    xc = xs[c] if off == 0 else pltpu.roll(xs[c], shift, 1)
                    for oc in range(C_OUT):
                        w_s = w_ref[((oc * C_IN + c) * KH + kh) * KW + kw]
                        accs[oc] = accs[oc] + xc * w_s

        for oc in range(C_OUT):
            o_ref[oc] = accs[oc].astype(o_ref.dtype)

    return kernel


def li_xiaoning_forward(x, weight, bias):
    """x: (N, 3, H, W) f32; weight: (6, 3, 3, 3); bias: (6,) -> (N, 6, OH, OW)."""
    n, c, h, w = x.shape
    assert c == C_IN
    oh = (h + 2 * PAD - KH) // STRIDE + 1
    ow = (w + 2 * PAD - KW) // STRIDE + 1
    hw = h * w
    lanes = _round_up(hw, _LANE)

    nb, n_pad = _pick_batch_block(n, lanes)
    grid = (n_pad // nb,)

    # ---- lane-dense, channel-major input: (C_IN, N_pad, L) (layout plumbing in XLA) ----
    x_cm = jnp.transpose(x.astype(jnp.float32), (1, 0, 2, 3)).reshape(C_IN, n, hw)
    x_cm = jnp.pad(x_cm, ((0, 0), (0, n_pad - n), (0, lanes - hw)))

    w_flat = weight.astype(jnp.float32).reshape(-1)   # (54,)  -> SMEM
    b_vec = bias.astype(jnp.float32).reshape(-1)      # (6,)   -> SMEM

    # VMEM budget: double-buffered in+out blocks plus a little headroom.
    step_bytes = (C_IN + C_OUT) * nb * lanes * 4
    vmem_limit = min(max(32 * 1024 * 1024, 2 * step_bytes + (4 << 20)), 64 * 1024 * 1024)

    flops = 2 * n * C_OUT * oh * ow * C_IN * KH * KW
    bytes_accessed = (x.size + n * C_OUT * oh * ow + weight.size + bias.size) * 4

    out_cm = pl.pallas_call(
        _make_conv_kernel(w),
        out_shape=jax.ShapeDtypeStruct((C_OUT, n_pad, lanes), jnp.float32),
        grid_spec=pltpu.PrefetchScalarGridSpec(
            num_scalar_prefetch=0,
            grid=grid,
            in_specs=[
                pl.BlockSpec(memory_space=pltpu.MemorySpace.SMEM),     # weights
                pl.BlockSpec(memory_space=pltpu.MemorySpace.SMEM),     # bias
                pl.BlockSpec((C_IN, nb, lanes), lambda i: (0, i, 0)),  # x block
            ],
            out_specs=pl.BlockSpec((C_OUT, nb, lanes), lambda i: (0, i, 0)),
        ),
        compiler_params=pltpu.CompilerParams(
            dimension_semantics=("parallel",),
            vmem_limit_bytes=vmem_limit,
        ),
        cost_estimate=pl.CostEstimate(
            flops=flops, transcendentals=0, bytes_accessed=bytes_accessed),
    )(w_flat, b_vec, x_cm)

    # Crop the full-lattice result back to the valid (OH, OW) window, restore NCHW.
    out = out_cm[:, :n, :hw].reshape(C_OUT, n, h, w)[:, :, :oh, :ow]
    return jnp.transpose(out, (1, 0, 2, 3))


if __name__ == "__main__":
    key = jax.random.PRNGKey(0)
    kx, kw_, kb = jax.random.split(key, 3)

    # Small, module-consistent shapes: batch=2, in_channels=3 (fixed by module), spatial=16.
    N, H, W = 2, 16, 16
    x = jax.random.normal(kx, (N, C_IN, H, W), dtype=jnp.float32)

    # Deterministic PyTorch-style uniform init (bound = 1/sqrt(fan_in)).
    fan_in = C_IN * KH * KW
    bound = 1.0 / (fan_in ** 0.5)
    weight = jax.random.uniform(kw_, (C_OUT, C_IN, KH, KW),
                                minval=-bound, maxval=bound, dtype=jnp.float32)
    bias = jax.random.uniform(kb, (C_OUT,),
                              minval=-bound, maxval=bound, dtype=jnp.float32)

    fwd = jax.jit(li_xiaoning_forward)
    out = jax.block_until_ready(fwd(x, weight, bias))

    # Silent correctness check against XLA's conv (NCHW, OIHW).
    ref = jax.lax.conv_general_dilated(
        x, weight, window_strides=(STRIDE, STRIDE), padding="VALID",
        dimension_numbers=("NCHW", "OIHW", "NCHW"),
    ) + bias.reshape(1, C_OUT, 1, 1)
    assert out.shape == (N, C_OUT, H - 2, W - 2)
    assert jnp.allclose(out, ref, atol=1e-4, rtol=1e-4)

    print("KERNEL_OK")
</pallas_src>

<mosaic_0001>
module attributes {stable_mosaic.version = 11 : i64} {
  func.func @kernel(%arg0: i32, %arg1: memref<162xf32, #tpu.memory_space<smem>>, %arg2: memref<6xf32, #tpu.memory_space<smem>>, %arg3: memref<3x2x256xf32, #tpu.memory_space<vmem>>, %arg4: memref<6x2x256xf32, #tpu.memory_space<vmem>>) attributes {dimension_semantics = [#tpu.dimension_semantics<parallel>], iteration_bounds = array<i64: 1>, scalar_prefetch = 0 : i64, scratch_operands = 0 : i64, tpu.core_type = #tpu.core_type<tc>, window_params = [{transform_indices = @transform_0, window_bounds = array<i64: 162>}, {transform_indices = @transform_1, window_bounds = array<i64: 6>}, {transform_indices = @transform_2, window_bounds = array<i64: 3, 2, 256>}, {transform_indices = @transform_3, window_bounds = array<i64: 6, 2, 256>}]} {
    %c0 = arith.constant 0 : index
    %c0_0 = arith.constant 0 : index
    %c0_1 = arith.constant 0 : index
    %0 = vector.load %arg3[%c0, %c0_0, %c0_1] : memref<3x2x256xf32, #tpu.memory_space<vmem>>, vector<1x2x256xf32>
    %1 = vector.shape_cast %0 : vector<1x2x256xf32> to vector<2x256xf32>
    %c1 = arith.constant 1 : index
    %c0_2 = arith.constant 0 : index
    %c0_3 = arith.constant 0 : index
    %2 = vector.load %arg3[%c1, %c0_2, %c0_3] : memref<3x2x256xf32, #tpu.memory_space<vmem>>, vector<1x2x256xf32>
    %3 = vector.shape_cast %2 : vector<1x2x256xf32> to vector<2x256xf32>
    %c2 = arith.constant 2 : index
    %c0_4 = arith.constant 0 : index
    %c0_5 = arith.constant 0 : index
    %4 = vector.load %arg3[%c2, %c0_4, %c0_5] : memref<3x2x256xf32, #tpu.memory_space<vmem>>, vector<1x2x256xf32>
    %5 = vector.shape_cast %4 : vector<1x2x256xf32> to vector<2x256xf32>
    %c0_6 = arith.constant 0 : index
    %6 = memref.load %arg2[%c0_6] : memref<6xf32, #tpu.memory_space<smem>>
    %7 = vector.broadcast %6 : f32 to vector<2x256xf32>
    %c1_7 = arith.constant 1 : index
    %8 = memref.load %arg2[%c1_7] : memref<6xf32, #tpu.memory_space<smem>>
    %9 = vector.broadcast %8 : f32 to vector<2x256xf32>
    %c2_8 = arith.constant 2 : index
    %10 = memref.load %arg2[%c2_8] : memref<6xf32, #tpu.memory_space<smem>>
    %11 = vector.broadcast %10 : f32 to vector<2x256xf32>
    %c3 = arith.constant 3 : index
    %12 = memref.load %arg2[%c3] : memref<6xf32, #tpu.memory_space<smem>>
    %13 = vector.broadcast %12 : f32 to vector<2x256xf32>
    %c4 = arith.constant 4 : index
    %14 = memref.load %arg2[%c4] : memref<6xf32, #tpu.memory_space<smem>>
    %15 = vector.broadcast %14 : f32 to vector<2x256xf32>
    %c5 = arith.constant 5 : index
    %16 = memref.load %arg2[%c5] : memref<6xf32, #tpu.memory_space<smem>>
    %17 = vector.broadcast %16 : f32 to vector<2x256xf32>
    %c0_9 = arith.constant 0 : index
    %18 = memref.load %arg1[%c0_9] : memref<162xf32, #tpu.memory_space<smem>>
    %19 = vector.broadcast %18 : f32 to vector<2x256xf32>
    %20 = arith.mulf %1, %19 : vector<2x256xf32>
    %21 = arith.addf %7, %20 : vector<2x256xf32>
    %c27 = arith.constant 27 : index
    %22 = memref.load %arg1[%c27] : memref<162xf32, #tpu.memory_space<smem>>
    %23 = vector.broadcast %22 : f32 to vector<2x256xf32>
    %24 = arith.mulf %1, %23 : vector<2x256xf32>
    %25 = arith.addf %9, %24 : vector<2x256xf32>
    %c54 = arith.constant 54 : index
    %26 = memref.load %arg1[%c54] : memref<162xf32, #tpu.memory_space<smem>>
    %27 = vector.broadcast %26 : f32 to vector<2x256xf32>
    %28 = arith.mulf %1, %27 : vector<2x256xf32>
    %29 = arith.addf %11, %28 : vector<2x256xf32>
    %c81 = arith.constant 81 : index
    %30 = memref.load %arg1[%c81] : memref<162xf32, #tpu.memory_space<smem>>
    %31 = vector.broadcast %30 : f32 to vector<2x256xf32>
    %32 = arith.mulf %1, %31 : vector<2x256xf32>
    %33 = arith.addf %13, %32 : vector<2x256xf32>
    %c108 = arith.constant 108 : index
    %34 = memref.load %arg1[%c108] : memref<162xf32, #tpu.memory_space<smem>>
    %35 = vector.broadcast %34 : f32 to vector<2x256xf32>
    %36 = arith.mulf %1, %35 : vector<2x256xf32>
    %37 = arith.addf %15, %36 : vector<2x256xf32>
    %c135 = arith.constant 135 : index
    %38 = memref.load %arg1[%c135] : memref<162xf32, #tpu.memory_space<smem>>
    %39 = vector.broadcast %38 : f32 to vector<2x256xf32>
    %40 = arith.mulf %1, %39 : vector<2x256xf32>
    %41 = arith.addf %17, %40 : vector<2x256xf32>
    %c9 = arith.constant 9 : index
    %42 = memref.load %arg1[%c9] : memref<162xf32, #tpu.memory_space<smem>>
    %43 = vector.broadcast %42 : f32 to vector<2x256xf32>
    %44 = arith.mulf %3, %43 : vector<2x256xf32>
    %45 = arith.addf %21, %44 : vector<2x256xf32>
    %c36 = arith.constant 36 : index
    %46 = memref.load %arg1[%c36] : memref<162xf32, #tpu.memory_space<smem>>
    %47 = vector.broadcast %46 : f32 to vector<2x256xf32>
    %48 = arith.mulf %3, %47 : vector<2x256xf32>
    %49 = arith.addf %25, %48 : vector<2x256xf32>
    %c63 = arith.constant 63 : index
    %50 = memref.load %arg1[%c63] : memref<162xf32, #tpu.memory_space<smem>>
    %51 = vector.broadcast %50 : f32 to vector<2x256xf32>
    %52 = arith.mulf %3, %51 : vector<2x256xf32>
    %53 = arith.addf %29, %52 : vector<2x256xf32>
    %c90 = arith.constant 90 : index
    %54 = memref.load %arg1[%c90] : memref<162xf32, #tpu.memory_space<smem>>
    %55 = vector.broadcast %54 : f32 to vector<2x256xf32>
    %56 = arith.mulf %3, %55 : vector<2x256xf32>
    %57 = arith.addf %33, %56 : vector<2x256xf32>
    %c117 = arith.constant 117 : index
    %58 = memref.load %arg1[%c117] : memref<162xf32, #tpu.memory_space<smem>>
    %59 = vector.broadcast %58 : f32 to vector<2x256xf32>
    %60 = arith.mulf %3, %59 : vector<2x256xf32>
    %61 = arith.addf %37, %60 : vector<2x256xf32>
    %c144 = arith.constant 144 : index
    %62 = memref.load %arg1[%c144] : memref<162xf32, #tpu.memory_space<smem>>
    %63 = vector.broadcast %62 : f32 to vector<2x256xf32>
    %64 = arith.mulf %3, %63 : vector<2x256xf32>
    %65 = arith.addf %41, %64 : vector<2x256xf32>
    %c18 = arith.constant 18 : index
    %66 = memref.load %arg1[%c18] : memref<162xf32, #tpu.memory_space<smem>>
    %67 = vector.broadcast %66 : f32 to vector<2x256xf32>
    %68 = arith.mulf %5, %67 : vector<2x256xf32>
    %69 = arith.addf %45, %68 : vector<2x256xf32>
    %c45 = arith.constant 45 : index
    %70 = memref.load %arg1[%c45] : memref<162xf32, #tpu.memory_space<smem>>
    %71 = vector.broadcast %70 : f32 to vector<2x256xf32>
    %72 = arith.mulf %5, %71 : vector<2x256xf32>
    %73 = arith.addf %49, %72 : vector<2x256xf32>
    %c72 = arith.constant 72 : index
    %74 = memref.load %arg1[%c72] : memref<162xf32, #tpu.memory_space<smem>>
    %75 = vector.broadcast %74 : f32 to vector<2x256xf32>
    %76 = arith.mulf %5, %75 : vector<2x256xf32>
    %77 = arith.addf %53, %76 : vector<2x256xf32>
    %c99 = arith.constant 99 : index
    %78 = memref.load %arg1[%c99] : memref<162xf32, #tpu.memory_space<smem>>
    %79 = vector.broadcast %78 : f32 to vector<2x256xf32>
    %80 = arith.mulf %5, %79 : vector<2x256xf32>
    %81 = arith.addf %57, %80 : vector<2x256xf32>
    %c126 = arith.constant 126 : index
    %82 = memref.load %arg1[%c126] : memref<162xf32, #tpu.memory_space<smem>>
    %83 = vector.broadcast %82 : f32 to vector<2x256xf32>
    %84 = arith.mulf %5, %83 : vector<2x256xf32>
    %85 = arith.addf %61, %84 : vector<2x256xf32>
    %c153 = arith.constant 153 : index
    %86 = memref.load %arg1[%c153] : memref<162xf32, #tpu.memory_space<smem>>
    %87 = vector.broadcast %86 : f32 to vector<2x256xf32>
    %88 = arith.mulf %5, %87 : vector<2x256xf32>
    %89 = arith.addf %65, %88 : vector<2x256xf32>
    %c255_i32 = arith.constant 255 : i32
    %90 = tpu.dynamic_rotate %1 by %c255_i32 dim 1 : vector<2x256xf32>, i32 -> vector<2x256xf32>
    %c1_10 = arith.constant 1 : index
    %91 = memref.load %arg1[%c1_10] : memref<162xf32, #tpu.memory_space<smem>>
    %92 = vector.broadcast %91 : f32 to vector<2x256xf32>
    %93 = arith.mulf %90, %92 : vector<2x256xf32>
    %94 = arith.addf %69, %93 : vector<2x256xf32>
    %c28 = arith.constant 28 : index
    %95 = memref.load %arg1[%c28] : memref<162xf32, #tpu.memory_space<smem>>
    %96 = vector.broadcast %95 : f32 to vector<2x256xf32>
    %97 = arith.mulf %90, %96 : vector<2x256xf32>
    %98 = arith.addf %73, %97 : vector<2x256xf32>
    %c55 = arith.constant 55 : index
    %99 = memref.load %arg1[%c55] : memref<162xf32, #tpu.memory_space<smem>>
    %100 = vector.broadcast %99 : f32 to vector<2x256xf32>
    %101 = arith.mulf %90, %100 : vector<2x256xf32>
    %102 = arith.addf %77, %101 : vector<2x256xf32>
    %c82 = arith.constant 82 : index
    %103 = memref.load %arg1[%c82] : memref<162xf32, #tpu.memory_space<smem>>
    %104 = vector.broadcast %103 : f32 to vector<2x256xf32>
    %105 = arith.mulf %90, %104 : vector<2x256xf32>
    %106 = arith.addf %81, %105 : vector<2x256xf32>
    %c109 = arith.constant 109 : index
    %107 = memref.load %arg1[%c109] : memref<162xf32, #tpu.memory_space<smem>>
    %108 = vector.broadcast %107 : f32 to vector<2x256xf32>
    %109 = arith.mulf %90, %108 : vector<2x256xf32>
    %110 = arith.addf %85, %109 : vector<2x256xf32>
    %c136 = arith.constant 136 : index
    %111 = memref.load %arg1[%c136] : memref<162xf32, #tpu.memory_space<smem>>
    %112 = vector.broadcast %111 : f32 to vector<2x256xf32>
    %113 = arith.mulf %90, %112 : vector<2x256xf32>
    %114 = arith.addf %89, %113 : vector<2x256xf32>
    %c255_i32_11 = arith.constant 255 : i32
    %115 = tpu.dynamic_rotate %3 by %c255_i32_11 dim 1 : vector<2x256xf32>, i32 -> vector<2x256xf32>
    %c10 = arith.constant 10 : index
    %116 = memref.load %arg1[%c10] : memref<162xf32, #tpu.memory_space<smem>>
    %117 = vector.broadcast %116 : f32 to vector<2x256xf32>
    %118 = arith.mulf %115, %117 : vector<2x256xf32>
    %119 = arith.addf %94, %118 : vector<2x256xf32>
    %c37 = arith.constant 37 : index
    %120 = memref.load %arg1[%c37] : memref<162xf32, #tpu.memory_space<smem>>
    %121 = vector.broadcast %120 : f32 to vector<2x256xf32>
    %122 = arith.mulf %115, %121 : vector<2x256xf32>
    %123 = arith.addf %98, %122 : vector<2x256xf32>
    %c64 = arith.constant 64 : index
    %124 = memref.load %arg1[%c64] : memref<162xf32, #tpu.memory_space<smem>>
    %125 = vector.broadcast %124 : f32 to vector<2x256xf32>
    %126 = arith.mulf %115, %125 : vector<2x256xf32>
    %127 = arith.addf %102, %126 : vector<2x256xf32>
    %c91 = arith.constant 91 : index
    %128 = memref.load %arg1[%c91] : memref<162xf32, #tpu.memory_space<smem>>
    %129 = vector.broadcast %128 : f32 to vector<2x256xf32>
    %130 = arith.mulf %115, %129 : vector<2x256xf32>
    %131 = arith.addf %106, %130 : vector<2x256xf32>
    %c118 = arith.constant 118 : index
    %132 = memref.load %arg1[%c118] : memref<162xf32, #tpu.memory_space<smem>>
    %133 = vector.broadcast %132 : f32 to vector<2x256xf32>
    %134 = arith.mulf %115, %133 : vector<2x256xf32>
    %135 = arith.addf %110, %134 : vector<2x256xf32>
    %c145 = arith.constant 145 : index
    %136 = memref.load %arg1[%c145] : memref<162xf32, #tpu.memory_space<smem>>
    %137 = vector.broadcast %136 : f32 to vector<2x256xf32>
    %138 = arith.mulf %115, %137 : vector<2x256xf32>
    %139 = arith.addf %114, %138 : vector<2x256xf32>
    %c255_i32_12 = arith.constant 255 : i32
    %140 = tpu.dynamic_rotate %5 by %c255_i32_12 dim 1 : vector<2x256xf32>, i32 -> vector<2x256xf32>
    %c19 = arith.constant 19 : index
    %141 = memref.load %arg1[%c19] : memref<162xf32, #tpu.memory_space<smem>>
    %142 = vector.broadcast %141 : f32 to vector<2x256xf32>
    %143 = arith.mulf %140, %142 : vector<2x256xf32>
    %144 = arith.addf %119, %143 : vector<2x256xf32>
    %c46 = arith.constant 46 : index
    %145 = memref.load %arg1[%c46] : memref<162xf32, #tpu.memory_space<smem>>
    %146 = vector.broadcast %145 : f32 to vector<2x256xf32>
    %147 = arith.mulf %140, %146 : vector<2x256xf32>
    %148 = arith.addf %123, %147 : vector<2x256xf32>
    %c73 = arith.constant 73 : index
    %149 = memref.load %arg1[%c73] : memref<162xf32, #tpu.memory_space<smem>>
    %150 = vector.broadcast %149 : f32 to vector<2x256xf32>
    %151 = arith.mulf %140, %150 : vector<2x256xf32>
    %152 = arith.addf %127, %151 : vector<2x256xf32>
    %c100 = arith.constant 100 : index
    %153 = memref.load %arg1[%c100] : memref<162xf32, #tpu.memory_space<smem>>
    %154 = vector.broadcast %153 : f32 to vector<2x256xf32>
    %155 = arith.mulf %140, %154 : vector<2x256xf32>
    %156 = arith.addf %131, %155 : vector<2x256xf32>
    %c127 = arith.constant 127 : index
    %157 = memref.load %arg1[%c127] : memref<162xf32, #tpu.memory_space<smem>>
    %158 = vector.broadcast %157 : f32 to vector<2x256xf32>
    %159 = arith.mulf %140, %158 : vector<2x256xf32>
    %160 = arith.addf %135, %159 : vector<2x256xf32>
    %c154 = arith.constant 154 : index
    %161 = memref.load %arg1[%c154] : memref<162xf32, #tpu.memory_space<smem>>
    %162 = vector.broadcast %161 : f32 to vector<2x256xf32>
    %163 = arith.mulf %140, %162 : vector<2x256xf32>
    %164 = arith.addf %139, %163 : vector<2x256xf32>
    %c254_i32 = arith.constant 254 : i32
    %165 = tpu.dynamic_rotate %1 by %c254_i32 dim 1 : vector<2x256xf32>, i32 -> vector<2x256xf32>
    %c2_13 = arith.constant 2 : index
    %166 = memref.load %arg1[%c2_13] : memref<162xf32, #tpu.memory_space<smem>>
    %167 = vector.broadcast %166 : f32 to vector<2x256xf32>
    %168 = arith.mulf %165, %167 : vector<2x256xf32>
    %169 = arith.addf %144, %168 : vector<2x256xf32>
    %c29 = arith.constant 29 : index
    %170 = memref.load %arg1[%c29] : memref<162xf32, #tpu.memory_space<smem>>
    %171 = vector.broadcast %170 : f32 to vector<2x256xf32>
    %172 = arith.mulf %165, %171 : vector<2x256xf32>
    %173 = arith.addf %148, %172 : vector<2x256xf32>
    %c56 = arith.constant 56 : index
    %174 = memref.load %arg1[%c56] : memref<162xf32, #tpu.memory_space<smem>>
    %175 = vector.broadcast %174 : f32 to vector<2x256xf32>
    %176 = arith.mulf %165, %175 : vector<2x256xf32>
    %177 = arith.addf %152, %176 : vector<2x256xf32>
    %c83 = arith.constant 83 : index
    %178 = memref.load %arg1[%c83] : memref<162xf32, #tpu.memory_space<smem>>
    %179 = vector.broadcast %178 : f32 to vector<2x256xf32>
    %180 = arith.mulf %165, %179 : vector<2x256xf32>
    %181 = arith.addf %156, %180 : vector<2x256xf32>
    %c110 = arith.constant 110 : index
    %182 = memref.load %arg1[%c110] : memref<162xf32, #tpu.memory_space<smem>>
    %183 = vector.broadcast %182 : f32 to vector<2x256xf32>
    %184 = arith.mulf %165, %183 : vector<2x256xf32>
    %185 = arith.addf %160, %184 : vector<2x256xf32>
    %c137 = arith.constant 137 : index
    %186 = memref.load %arg1[%c137] : memref<162xf32, #tpu.memory_space<smem>>
    %187 = vector.broadcast %186 : f32 to vector<2x256xf32>
    %188 = arith.mulf %165, %187 : vector<2x256xf32>
    %189 = arith.addf %164, %188 : vector<2x256xf32>
    %c254_i32_14 = arith.constant 254 : i32
    %190 = tpu.dynamic_rotate %3 by %c254_i32_14 dim 1 : vector<2x256xf32>, i32 -> vector<2x256xf32>
    %c11 = arith.constant 11 : index
    %191 = memref.load %arg1[%c11] : memref<162xf32, #tpu.memory_space<smem>>
    %192 = vector.broadcast %191 : f32 to vector<2x256xf32>
    %193 = arith.mulf %190, %192 : vector<2x256xf32>
    %194 = arith.addf %169, %193 : vector<2x256xf32>
    %c38 = arith.constant 38 : index
    %195 = memref.load %arg1[%c38] : memref<162xf32, #tpu.memory_space<smem>>
    %196 = vector.broadcast %195 : f32 to vector<2x256xf32>
    %197 = arith.mulf %190, %196 : vector<2x256xf32>
    %198 = arith.addf %173, %197 : vector<2x256xf32>
    %c65 = arith.constant 65 : index
    %199 = memref.load %arg1[%c65] : memref<162xf32, #tpu.memory_space<smem>>
    %200 = vector.broadcast %199 : f32 to vector<2x256xf32>
    %201 = arith.mulf %190, %200 : vector<2x256xf32>
    %202 = arith.addf %177, %201 : vector<2x256xf32>
    %c92 = arith.constant 92 : index
    %203 = memref.load %arg1[%c92] : memref<162xf32, #tpu.memory_space<smem>>
    %204 = vector.broadcast %203 : f32 to vector<2x256xf32>
    %205 = arith.mulf %190, %204 : vector<2x256xf32>
    %206 = arith.addf %181, %205 : vector<2x256xf32>
    %c119 = arith.constant 119 : index
    %207 = memref.load %arg1[%c119] : memref<162xf32, #tpu.memory_space<smem>>
    %208 = vector.broadcast %207 : f32 to vector<2x256xf32>
    %209 = arith.mulf %190, %208 : vector<2x256xf32>
    %210 = arith.addf %185, %209 : vector<2x256xf32>
    %c146 = arith.constant 146 : index
    %211 = memref.load %arg1[%c146] : memref<162xf32, #tpu.memory_space<smem>>
    %212 = vector.broadcast %211 : f32 to vector<2x256xf32>
    %213 = arith.mulf %190, %212 : vector<2x256xf32>
    %214 = arith.addf %189, %213 : vector<2x256xf32>
    %c254_i32_15 = arith.constant 254 : i32
    %215 = tpu.dynamic_rotate %5 by %c254_i32_15 dim 1 : vector<2x256xf32>, i32 -> vector<2x256xf32>
    %c20 = arith.constant 20 : index
    %216 = memref.load %arg1[%c20] : memref<162xf32, #tpu.memory_space<smem>>
    %217 = vector.broadcast %216 : f32 to vector<2x256xf32>
    %218 = arith.mulf %215, %217 : vector<2x256xf32>
    %219 = arith.addf %194, %218 : vector<2x256xf32>
    %c47 = arith.constant 47 : index
    %220 = memref.load %arg1[%c47] : memref<162xf32, #tpu.memory_space<smem>>
    %221 = vector.broadcast %220 : f32 to vector<2x256xf32>
    %222 = arith.mulf %215, %221 : vector<2x256xf32>
    %223 = arith.addf %198, %222 : vector<2x256xf32>
    %c74 = arith.constant 74 : index
    %224 = memref.load %arg1[%c74] : memref<162xf32, #tpu.memory_space<smem>>
    %225 = vector.broadcast %224 : f32 to vector<2x256xf32>
    %226 = arith.mulf %215, %225 : vector<2x256xf32>
    %227 = arith.addf %202, %226 : vector<2x256xf32>
    %c101 = arith.constant 101 : index
    %228 = memref.load %arg1[%c101] : memref<162xf32, #tpu.memory_space<smem>>
    %229 = vector.broadcast %228 : f32 to vector<2x256xf32>
    %230 = arith.mulf %215, %229 : vector<2x256xf32>
    %231 = arith.addf %206, %230 : vector<2x256xf32>
    %c128 = arith.constant 128 : index
    %232 = memref.load %arg1[%c128] : memref<162xf32, #tpu.memory_space<smem>>
    %233 = vector.broadcast %232 : f32 to vector<2x256xf32>
    %234 = arith.mulf %215, %233 : vector<2x256xf32>
    %235 = arith.addf %210, %234 : vector<2x256xf32>
    %c155 = arith.constant 155 : index
    %236 = memref.load %arg1[%c155] : memref<162xf32, #tpu.memory_space<smem>>
    %237 = vector.broadcast %236 : f32 to vector<2x256xf32>
    %238 = arith.mulf %215, %237 : vector<2x256xf32>
    %239 = arith.addf %214, %238 : vector<2x256xf32>
    %c240_i32 = arith.constant 240 : i32
    %240 = tpu.dynamic_rotate %1 by %c240_i32 dim 1 : vector<2x256xf32>, i32 -> vector<2x256xf32>
    %c3_16 = arith.constant 3 : index
    %241 = memref.load %arg1[%c3_16] : memref<162xf32, #tpu.memory_space<smem>>
    %242 = vector.broadcast %241 : f32 to vector<2x256xf32>
    %243 = arith.mulf %240, %242 : vector<2x256xf32>
    %244 = arith.addf %219, %243 : vector<2x256xf32>
    %c30 = arith.constant 30 : index
    %245 = memref.load %arg1[%c30] : memref<162xf32, #tpu.memory_space<smem>>
    %246 = vector.broadcast %245 : f32 to vector<2x256xf32>
    %247 = arith.mulf %240, %246 : vector<2x256xf32>
    %248 = arith.addf %223, %247 : vector<2x256xf32>
    %c57 = arith.constant 57 : index
    %249 = memref.load %arg1[%c57] : memref<162xf32, #tpu.memory_space<smem>>
    %250 = vector.broadcast %249 : f32 to vector<2x256xf32>
    %251 = arith.mulf %240, %250 : vector<2x256xf32>
    %252 = arith.addf %227, %251 : vector<2x256xf32>
    %c84 = arith.constant 84 : index
    %253 = memref.load %arg1[%c84] : memref<162xf32, #tpu.memory_space<smem>>
    %254 = vector.broadcast %253 : f32 to vector<2x256xf32>
    %255 = arith.mulf %240, %254 : vector<2x256xf32>
    %256 = arith.addf %231, %255 : vector<2x256xf32>
    %c111 = arith.constant 111 : index
    %257 = memref.load %arg1[%c111] : memref<162xf32, #tpu.memory_space<smem>>
    %258 = vector.broadcast %257 : f32 to vector<2x256xf32>
    %259 = arith.mulf %240, %258 : vector<2x256xf32>
    %260 = arith.addf %235, %259 : vector<2x256xf32>
    %c138 = arith.constant 138 : index
    %261 = memref.load %arg1[%c138] : memref<162xf32, #tpu.memory_space<smem>>
    %262 = vector.broadcast %261 : f32 to vector<2x256xf32>
    %263 = arith.mulf %240, %262 : vector<2x256xf32>
    %264 = arith.addf %239, %263 : vector<2x256xf32>
    %c240_i32_17 = arith.constant 240 : i32
    %265 = tpu.dynamic_rotate %3 by %c240_i32_17 dim 1 : vector<2x256xf32>, i32 -> vector<2x256xf32>
    %c12 = arith.constant 12 : index
    %266 = memref.load %arg1[%c12] : memref<162xf32, #tpu.memory_space<smem>>
    %267 = vector.broadcast %266 : f32 to vector<2x256xf32>
    %268 = arith.mulf %265, %267 : vector<2x256xf32>
    %269 = arith.addf %244, %268 : vector<2x256xf32>
    %c39 = arith.constant 39 : index
    %270 = memref.load %arg1[%c39] : memref<162xf32, #tpu.memory_space<smem>>
    %271 = vector.broadcast %270 : f32 to vector<2x256xf32>
    %272 = arith.mulf %265, %271 : vector<2x256xf32>
    %273 = arith.addf %248, %272 : vector<2x256xf32>
    %c66 = arith.constant 66 : index
    %274 = memref.load %arg1[%c66] : memref<162xf32, #tpu.memory_space<smem>>
    %275 = vector.broadcast %274 : f32 to vector<2x256xf32>
    %276 = arith.mulf %265, %275 : vector<2x256xf32>
    %277 = arith.addf %252, %276 : vector<2x256xf32>
    %c93 = arith.constant 93 : index
    %278 = memref.load %arg1[%c93] : memref<162xf32, #tpu.memory_space<smem>>
    %279 = vector.broadcast %278 : f32 to vector<2x256xf32>
    %280 = arith.mulf %265, %279 : vector<2x256xf32>
    %281 = arith.addf %256, %280 : vector<2x256xf32>
    %c120 = arith.constant 120 : index
    %282 = memref.load %arg1[%c120] : memref<162xf32, #tpu.memory_space<smem>>
    %283 = vector.broadcast %282 : f32 to vector<2x256xf32>
    %284 = arith.mulf %265, %283 : vector<2x256xf32>
    %285 = arith.addf %260, %284 : vector<2x256xf32>
    %c147 = arith.constant 147 : index
    %286 = memref.load %arg1[%c147] : memref<162xf32, #tpu.memory_space<smem>>
    %287 = vector.broadcast %286 : f32 to vector<2x256xf32>
    %288 = arith.mulf %265, %287 : vector<2x256xf32>
    %289 = arith.addf %264, %288 : vector<2x256xf32>
    %c240_i32_18 = arith.constant 240 : i32
    %290 = tpu.dynamic_rotate %5 by %c240_i32_18 dim 1 : vector<2x256xf32>, i32 -> vector<2x256xf32>
    %c21 = arith.constant 21 : index
    %291 = memref.load %arg1[%c21] : memref<162xf32, #tpu.memory_space<smem>>
    %292 = vector.broadcast %291 : f32 to vector<2x256xf32>
    %293 = arith.mulf %290, %292 : vector<2x256xf32>
    %294 = arith.addf %269, %293 : vector<2x256xf32>
    %c48 = arith.constant 48 : index
    %295 = memref.load %arg1[%c48] : memref<162xf32, #tpu.memory_space<smem>>
    %296 = vector.broadcast %295 : f32 to vector<2x256xf32>
    %297 = arith.mulf %290, %296 : vector<2x256xf32>
    %298 = arith.addf %273, %297 : vector<2x256xf32>
    %c75 = arith.constant 75 : index
    %299 = memref.load %arg1[%c75] : memref<162xf32, #tpu.memory_space<smem>>
    %300 = vector.broadcast %299 : f32 to vector<2x256xf32>
    %301 = arith.mulf %290, %300 : vector<2x256xf32>
    %302 = arith.addf %277, %301 : vector<2x256xf32>
    %c102 = arith.constant 102 : index
    %303 = memref.load %arg1[%c102] : memref<162xf32, #tpu.memory_space<smem>>
    %304 = vector.broadcast %303 : f32 to vector<2x256xf32>
    %305 = arith.mulf %290, %304 : vector<2x256xf32>
    %306 = arith.addf %281, %305 : vector<2x256xf32>
    %c129 = arith.constant 129 : index
    %307 = memref.load %arg1[%c129] : memref<162xf32, #tpu.memory_space<smem>>
    %308 = vector.broadcast %307 : f32 to vector<2x256xf32>
    %309 = arith.mulf %290, %308 : vector<2x256xf32>
    %310 = arith.addf %285, %309 : vector<2x256xf32>
    %c156 = arith.constant 156 : index
    %311 = memref.load %arg1[%c156] : memref<162xf32, #tpu.memory_space<smem>>
    %312 = vector.broadcast %311 : f32 to vector<2x256xf32>
    %313 = arith.mulf %290, %312 : vector<2x256xf32>
    %314 = arith.addf %289, %313 : vector<2x256xf32>
    %c239_i32 = arith.constant 239 : i32
    %315 = tpu.dynamic_rotate %1 by %c239_i32 dim 1 : vector<2x256xf32>, i32 -> vector<2x256xf32>
    %c4_19 = arith.constant 4 : index
    %316 = memref.load %arg1[%c4_19] : memref<162xf32, #tpu.memory_space<smem>>
    %317 = vector.broadcast %316 : f32 to vector<2x256xf32>
    %318 = arith.mulf %315, %317 : vector<2x256xf32>
    %319 = arith.addf %294, %318 : vector<2x256xf32>
    %c31 = arith.constant 31 : index
    %320 = memref.load %arg1[%c31] : memref<162xf32, #tpu.memory_space<smem>>
    %321 = vector.broadcast %320 : f32 to vector<2x256xf32>
    %322 = arith.mulf %315, %321 : vector<2x256xf32>
    %323 = arith.addf %298, %322 : vector<2x256xf32>
    %c58 = arith.constant 58 : index
    %324 = memref.load %arg1[%c58] : memref<162xf32, #tpu.memory_space<smem>>
    %325 = vector.broadcast %324 : f32 to vector<2x256xf32>
    %326 = arith.mulf %315, %325 : vector<2x256xf32>
    %327 = arith.addf %302, %326 : vector<2x256xf32>
    %c85 = arith.constant 85 : index
    %328 = memref.load %arg1[%c85] : memref<162xf32, #tpu.memory_space<smem>>
    %329 = vector.broadcast %328 : f32 to vector<2x256xf32>
    %330 = arith.mulf %315, %329 : vector<2x256xf32>
    %331 = arith.addf %306, %330 : vector<2x256xf32>
    %c112 = arith.constant 112 : index
    %332 = memref.load %arg1[%c112] : memref<162xf32, #tpu.memory_space<smem>>
    %333 = vector.broadcast %332 : f32 to vector<2x256xf32>
    %334 = arith.mulf %315, %333 : vector<2x256xf32>
    %335 = arith.addf %310, %334 : vector<2x256xf32>
    %c139 = arith.constant 139 : index
    %336 = memref.load %arg1[%c139] : memref<162xf32, #tpu.memory_space<smem>>
    %337 = vector.broadcast %336 : f32 to vector<2x256xf32>
    %338 = arith.mulf %315, %337 : vector<2x256xf32>
    %339 = arith.addf %314, %338 : vector<2x256xf32>
    %c239_i32_20 = arith.constant 239 : i32
    %340 = tpu.dynamic_rotate %3 by %c239_i32_20 dim 1 : vector<2x256xf32>, i32 -> vector<2x256xf32>
    %c13 = arith.constant 13 : index
    %341 = memref.load %arg1[%c13] : memref<162xf32, #tpu.memory_space<smem>>
    %342 = vector.broadcast %341 : f32 to vector<2x256xf32>
    %343 = arith.mulf %340, %342 : vector<2x256xf32>
    %344 = arith.addf %319, %343 : vector<2x256xf32>
    %c40 = arith.constant 40 : index
    %345 = memref.load %arg1[%c40] : memref<162xf32, #tpu.memory_space<smem>>
    %346 = vector.broadcast %345 : f32 to vector<2x256xf32>
    %347 = arith.mulf %340, %346 : vector<2x256xf32>
    %348 = arith.addf %323, %347 : vector<2x256xf32>
    %c67 = arith.constant 67 : index
    %349 = memref.load %arg1[%c67] : memref<162xf32, #tpu.memory_space<smem>>
    %350 = vector.broadcast %349 : f32 to vector<2x256xf32>
    %351 = arith.mulf %340, %350 : vector<2x256xf32>
    %352 = arith.addf %327, %351 : vector<2x256xf32>
    %c94 = arith.constant 94 : index
    %353 = memref.load %arg1[%c94] : memref<162xf32, #tpu.memory_space<smem>>
    %354 = vector.broadcast %353 : f32 to vector<2x256xf32>
    %355 = arith.mulf %340, %354 : vector<2x256xf32>
    %356 = arith.addf %331, %355 : vector<2x256xf32>
    %c121 = arith.constant 121 : index
    %357 = memref.load %arg1[%c121] : memref<162xf32, #tpu.memory_space<smem>>
    %358 = vector.broadcast %357 : f32 to vector<2x256xf32>
    %359 = arith.mulf %340, %358 : vector<2x256xf32>
    %360 = arith.addf %335, %359 : vector<2x256xf32>
    %c148 = arith.constant 148 : index
    %361 = memref.load %arg1[%c148] : memref<162xf32, #tpu.memory_space<smem>>
    %362 = vector.broadcast %361 : f32 to vector<2x256xf32>
    %363 = arith.mulf %340, %362 : vector<2x256xf32>
    %364 = arith.addf %339, %363 : vector<2x256xf32>
    %c239_i32_21 = arith.constant 239 : i32
    %365 = tpu.dynamic_rotate %5 by %c239_i32_21 dim 1 : vector<2x256xf32>, i32 -> vector<2x256xf32>
    %c22 = arith.constant 22 : index
    %366 = memref.load %arg1[%c22] : memref<162xf32, #tpu.memory_space<smem>>
    %367 = vector.broadcast %366 : f32 to vector<2x256xf32>
    %368 = arith.mulf %365, %367 : vector<2x256xf32>
    %369 = arith.addf %344, %368 : vector<2x256xf32>
    %c49 = arith.constant 49 : index
    %370 = memref.load %arg1[%c49] : memref<162xf32, #tpu.memory_space<smem>>
    %371 = vector.broadcast %370 : f32 to vector<2x256xf32>
    %372 = arith.mulf %365, %371 : vector<2x256xf32>
    %373 = arith.addf %348, %372 : vector<2x256xf32>
    %c76 = arith.constant 76 : index
    %374 = memref.load %arg1[%c76] : memref<162xf32, #tpu.memory_space<smem>>
    %375 = vector.broadcast %374 : f32 to vector<2x256xf32>
    %376 = arith.mulf %365, %375 : vector<2x256xf32>
    %377 = arith.addf %352, %376 : vector<2x256xf32>
    %c103 = arith.constant 103 : index
    %378 = memref.load %arg1[%c103] : memref<162xf32, #tpu.memory_space<smem>>
    %379 = vector.broadcast %378 : f32 to vector<2x256xf32>
    %380 = arith.mulf %365, %379 : vector<2x256xf32>
    %381 = arith.addf %356, %380 : vector<2x256xf32>
    %c130 = arith.constant 130 : index
    %382 = memref.load %arg1[%c130] : memref<162xf32, #tpu.memory_space<smem>>
    %383 = vector.broadcast %382 : f32 to vector<2x256xf32>
    %384 = arith.mulf %365, %383 : vector<2x256xf32>
    %385 = arith.addf %360, %384 : vector<2x256xf32>
    %c157 = arith.constant 157 : index
    %386 = memref.load %arg1[%c157] : memref<162xf32, #tpu.memory_space<smem>>
    %387 = vector.broadcast %386 : f32 to vector<2x256xf32>
    %388 = arith.mulf %365, %387 : vector<2x256xf32>
    %389 = arith.addf %364, %388 : vector<2x256xf32>
    %c238_i32 = arith.constant 238 : i32
    %390 = tpu.dynamic_rotate %1 by %c238_i32 dim 1 : vector<2x256xf32>, i32 -> vector<2x256xf32>
    %c5_22 = arith.constant 5 : index
    %391 = memref.load %arg1[%c5_22] : memref<162xf32, #tpu.memory_space<smem>>
    %392 = vector.broadcast %391 : f32 to vector<2x256xf32>
    %393 = arith.mulf %390, %392 : vector<2x256xf32>
    %394 = arith.addf %369, %393 : vector<2x256xf32>
    %c32 = arith.constant 32 : index
    %395 = memref.load %arg1[%c32] : memref<162xf32, #tpu.memory_space<smem>>
    %396 = vector.broadcast %395 : f32 to vector<2x256xf32>
    %397 = arith.mulf %390, %396 : vector<2x256xf32>
    %398 = arith.addf %373, %397 : vector<2x256xf32>
    %c59 = arith.constant 59 : index
    %399 = memref.load %arg1[%c59] : memref<162xf32, #tpu.memory_space<smem>>
    %400 = vector.broadcast %399 : f32 to vector<2x256xf32>
    %401 = arith.mulf %390, %400 : vector<2x256xf32>
    %402 = arith.addf %377, %401 : vector<2x256xf32>
    %c86 = arith.constant 86 : index
    %403 = memref.load %arg1[%c86] : memref<162xf32, #tpu.memory_space<smem>>
    %404 = vector.broadcast %403 : f32 to vector<2x256xf32>
    %405 = arith.mulf %390, %404 : vector<2x256xf32>
    %406 = arith.addf %381, %405 : vector<2x256xf32>
    %c113 = arith.constant 113 : index
    %407 = memref.load %arg1[%c113] : memref<162xf32, #tpu.memory_space<smem>>
    %408 = vector.broadcast %407 : f32 to vector<2x256xf32>
    %409 = arith.mulf %390, %408 : vector<2x256xf32>
    %410 = arith.addf %385, %409 : vector<2x256xf32>
    %c140 = arith.constant 140 : index
    %411 = memref.load %arg1[%c140] : memref<162xf32, #tpu.memory_space<smem>>
    %412 = vector.broadcast %411 : f32 to vector<2x256xf32>
    %413 = arith.mulf %390, %412 : vector<2x256xf32>
    %414 = arith.addf %389, %413 : vector<2x256xf32>
    %c238_i32_23 = arith.constant 238 : i32
    %415 = tpu.dynamic_rotate %3 by %c238_i32_23 dim 1 : vector<2x256xf32>, i32 -> vector<2x256xf32>
    %c14 = arith.constant 14 : index
    %416 = memref.load %arg1[%c14] : memref<162xf32, #tpu.memory_space<smem>>
    %417 = vector.broadcast %416 : f32 to vector<2x256xf32>
    %418 = arith.mulf %415, %417 : vector<2x256xf32>
    %419 = arith.addf %394, %418 : vector<2x256xf32>
    %c41 = arith.constant 41 : index
    %420 = memref.load %arg1[%c41] : memref<162xf32, #tpu.memory_space<smem>>
    %421 = vector.broadcast %420 : f32 to vector<2x256xf32>
    %422 = arith.mulf %415, %421 : vector<2x256xf32>
    %423 = arith.addf %398, %422 : vector<2x256xf32>
    %c68 = arith.constant 68 : index
    %424 = memref.load %arg1[%c68] : memref<162xf32, #tpu.memory_space<smem>>
    %425 = vector.broadcast %424 : f32 to vector<2x256xf32>
    %426 = arith.mulf %415, %425 : vector<2x256xf32>
    %427 = arith.addf %402, %426 : vector<2x256xf32>
    %c95 = arith.constant 95 : index
    %428 = memref.load %arg1[%c95] : memref<162xf32, #tpu.memory_space<smem>>
    %429 = vector.broadcast %428 : f32 to vector<2x256xf32>
    %430 = arith.mulf %415, %429 : vector<2x256xf32>
    %431 = arith.addf %406, %430 : vector<2x256xf32>
    %c122 = arith.constant 122 : index
    %432 = memref.load %arg1[%c122] : memref<162xf32, #tpu.memory_space<smem>>
    %433 = vector.broadcast %432 : f32 to vector<2x256xf32>
    %434 = arith.mulf %415, %433 : vector<2x256xf32>
    %435 = arith.addf %410, %434 : vector<2x256xf32>
    %c149 = arith.constant 149 : index
    %436 = memref.load %arg1[%c149] : memref<162xf32, #tpu.memory_space<smem>>
    %437 = vector.broadcast %436 : f32 to vector<2x256xf32>
    %438 = arith.mulf %415, %437 : vector<2x256xf32>
    %439 = arith.addf %414, %438 : vector<2x256xf32>
    %c238_i32_24 = arith.constant 238 : i32
    %440 = tpu.dynamic_rotate %5 by %c238_i32_24 dim 1 : vector<2x256xf32>, i32 -> vector<2x256xf32>
    %c23 = arith.constant 23 : index
    %441 = memref.load %arg1[%c23] : memref<162xf32, #tpu.memory_space<smem>>
    %442 = vector.broadcast %441 : f32 to vector<2x256xf32>
    %443 = arith.mulf %440, %442 : vector<2x256xf32>
    %444 = arith.addf %419, %443 : vector<2x256xf32>
    %c50 = arith.constant 50 : index
    %445 = memref.load %arg1[%c50] : memref<162xf32, #tpu.memory_space<smem>>
    %446 = vector.broadcast %445 : f32 to vector<2x256xf32>
    %447 = arith.mulf %440, %446 : vector<2x256xf32>
    %448 = arith.addf %423, %447 : vector<2x256xf32>
    %c77 = arith.constant 77 : index
    %449 = memref.load %arg1[%c77] : memref<162xf32, #tpu.memory_space<smem>>
    %450 = vector.broadcast %449 : f32 to vector<2x256xf32>
    %451 = arith.mulf %440, %450 : vector<2x256xf32>
    %452 = arith.addf %427, %451 : vector<2x256xf32>
    %c104 = arith.constant 104 : index
    %453 = memref.load %arg1[%c104] : memref<162xf32, #tpu.memory_space<smem>>
    %454 = vector.broadcast %453 : f32 to vector<2x256xf32>
    %455 = arith.mulf %440, %454 : vector<2x256xf32>
    %456 = arith.addf %431, %455 : vector<2x256xf32>
    %c131 = arith.constant 131 : index
    %457 = memref.load %arg1[%c131] : memref<162xf32, #tpu.memory_space<smem>>
    %458 = vector.broadcast %457 : f32 to vector<2x256xf32>
    %459 = arith.mulf %440, %458 : vector<2x256xf32>
    %460 = arith.addf %435, %459 : vector<2x256xf32>
    %c158 = arith.constant 158 : index
    %461 = memref.load %arg1[%c158] : memref<162xf32, #tpu.memory_space<smem>>
    %462 = vector.broadcast %461 : f32 to vector<2x256xf32>
    %463 = arith.mulf %440, %462 : vector<2x256xf32>
    %464 = arith.addf %439, %463 : vector<2x256xf32>
    %c224_i32 = arith.constant 224 : i32
    %465 = tpu.dynamic_rotate %1 by %c224_i32 dim 1 : vector<2x256xf32>, i32 -> vector<2x256xf32>
    %c6 = arith.constant 6 : index
    %466 = memref.load %arg1[%c6] : memref<162xf32, #tpu.memory_space<smem>>
    %467 = vector.broadcast %466 : f32 to vector<2x256xf32>
    %468 = arith.mulf %465, %467 : vector<2x256xf32>
    %469 = arith.addf %444, %468 : vector<2x256xf32>
    %c33 = arith.constant 33 : index
    %470 = memref.load %arg1[%c33] : memref<162xf32, #tpu.memory_space<smem>>
    %471 = vector.broadcast %470 : f32 to vector<2x256xf32>
    %472 = arith.mulf %465, %471 : vector<2x256xf32>
    %473 = arith.addf %448, %472 : vector<2x256xf32>
    %c60 = arith.constant 60 : index
    %474 = memref.load %arg1[%c60] : memref<162xf32, #tpu.memory_space<smem>>
    %475 = vector.broadcast %474 : f32 to vector<2x256xf32>
    %476 = arith.mulf %465, %475 : vector<2x256xf32>
    %477 = arith.addf %452, %476 : vector<2x256xf32>
    %c87 = arith.constant 87 : index
    %478 = memref.load %arg1[%c87] : memref<162xf32, #tpu.memory_space<smem>>
    %479 = vector.broadcast %478 : f32 to vector<2x256xf32>
    %480 = arith.mulf %465, %479 : vector<2x256xf32>
    %481 = arith.addf %456, %480 : vector<2x256xf32>
    %c114 = arith.constant 114 : index
    %482 = memref.load %arg1[%c114] : memref<162xf32, #tpu.memory_space<smem>>
    %483 = vector.broadcast %482 : f32 to vector<2x256xf32>
    %484 = arith.mulf %465, %483 : vector<2x256xf32>
    %485 = arith.addf %460, %484 : vector<2x256xf32>
    %c141 = arith.constant 141 : index
    %486 = memref.load %arg1[%c141] : memref<162xf32, #tpu.memory_space<smem>>
    %487 = vector.broadcast %486 : f32 to vector<2x256xf32>
    %488 = arith.mulf %465, %487 : vector<2x256xf32>
    %489 = arith.addf %464, %488 : vector<2x256xf32>
    %c224_i32_25 = arith.constant 224 : i32
    %490 = tpu.dynamic_rotate %3 by %c224_i32_25 dim 1 : vector<2x256xf32>, i32 -> vector<2x256xf32>
    %c15 = arith.constant 15 : index
    %491 = memref.load %arg1[%c15] : memref<162xf32, #tpu.memory_space<smem>>
    %492 = vector.broadcast %491 : f32 to vector<2x256xf32>
    %493 = arith.mulf %490, %492 : vector<2x256xf32>
    %494 = arith.addf %469, %493 : vector<2x256xf32>
    %c42 = arith.constant 42 : index
    %495 = memref.load %arg1[%c42] : memref<162xf32, #tpu.memory_space<smem>>
    %496 = vector.broadcast %495 : f32 to vector<2x256xf32>
    %497 = arith.mulf %490, %496 : vector<2x256xf32>
    %498 = arith.addf %473, %497 : vector<2x256xf32>
    %c69 = arith.constant 69 : index
    %499 = memref.load %arg1[%c69] : memref<162xf32, #tpu.memory_space<smem>>
    %500 = vector.broadcast %499 : f32 to vector<2x256xf32>
    %501 = arith.mulf %490, %500 : vector<2x256xf32>
    %502 = arith.addf %477, %501 : vector<2x256xf32>
    %c96 = arith.constant 96 : index
    %503 = memref.load %arg1[%c96] : memref<162xf32, #tpu.memory_space<smem>>
    %504 = vector.broadcast %503 : f32 to vector<2x256xf32>
    %505 = arith.mulf %490, %504 : vector<2x256xf32>
    %506 = arith.addf %481, %505 : vector<2x256xf32>
    %c123 = arith.constant 123 : index
    %507 = memref.load %arg1[%c123] : memref<162xf32, #tpu.memory_space<smem>>
    %508 = vector.broadcast %507 : f32 to vector<2x256xf32>
    %509 = arith.mulf %490, %508 : vector<2x256xf32>
    %510 = arith.addf %485, %509 : vector<2x256xf32>
    %c150 = arith.constant 150 : index
    %511 = memref.load %arg1[%c150] : memref<162xf32, #tpu.memory_space<smem>>
    %512 = vector.broadcast %511 : f32 to vector<2x256xf32>
    %513 = arith.mulf %490, %512 : vector<2x256xf32>
    %514 = arith.addf %489, %513 : vector<2x256xf32>
    %c224_i32_26 = arith.constant 224 : i32
    %515 = tpu.dynamic_rotate %5 by %c224_i32_26 dim 1 : vector<2x256xf32>, i32 -> vector<2x256xf32>
    %c24 = arith.constant 24 : index
    %516 = memref.load %arg1[%c24] : memref<162xf32, #tpu.memory_space<smem>>
    %517 = vector.broadcast %516 : f32 to vector<2x256xf32>
    %518 = arith.mulf %515, %517 : vector<2x256xf32>
    %519 = arith.addf %494, %518 : vector<2x256xf32>
    %c51 = arith.constant 51 : index
    %520 = memref.load %arg1[%c51] : memref<162xf32, #tpu.memory_space<smem>>
    %521 = vector.broadcast %520 : f32 to vector<2x256xf32>
    %522 = arith.mulf %515, %521 : vector<2x256xf32>
    %523 = arith.addf %498, %522 : vector<2x256xf32>
    %c78 = arith.constant 78 : index
    %524 = memref.load %arg1[%c78] : memref<162xf32, #tpu.memory_space<smem>>
    %525 = vector.broadcast %524 : f32 to vector<2x256xf32>
    %526 = arith.mulf %515, %525 : vector<2x256xf32>
    %527 = arith.addf %502, %526 : vector<2x256xf32>
    %c105 = arith.constant 105 : index
    %528 = memref.load %arg1[%c105] : memref<162xf32, #tpu.memory_space<smem>>
    %529 = vector.broadcast %528 : f32 to vector<2x256xf32>
    %530 = arith.mulf %515, %529 : vector<2x256xf32>
    %531 = arith.addf %506, %530 : vector<2x256xf32>
    %c132 = arith.constant 132 : index
    %532 = memref.load %arg1[%c132] : memref<162xf32, #tpu.memory_space<smem>>
    %533 = vector.broadcast %532 : f32 to vector<2x256xf32>
    %534 = arith.mulf %515, %533 : vector<2x256xf32>
    %535 = arith.addf %510, %534 : vector<2x256xf32>
    %c159 = arith.constant 159 : index
    %536 = memref.load %arg1[%c159] : memref<162xf32, #tpu.memory_space<smem>>
    %537 = vector.broadcast %536 : f32 to vector<2x256xf32>
    %538 = arith.mulf %515, %537 : vector<2x256xf32>
    %539 = arith.addf %514, %538 : vector<2x256xf32>
    %c223_i32 = arith.constant 223 : i32
    %540 = tpu.dynamic_rotate %1 by %c223_i32 dim 1 : vector<2x256xf32>, i32 -> vector<2x256xf32>
    %c7 = arith.constant 7 : index
    %541 = memref.load %arg1[%c7] : memref<162xf32, #tpu.memory_space<smem>>
    %542 = vector.broadcast %541 : f32 to vector<2x256xf32>
    %543 = arith.mulf %540, %542 : vector<2x256xf32>
    %544 = arith.addf %519, %543 : vector<2x256xf32>
    %c34 = arith.constant 34 : index
    %545 = memref.load %arg1[%c34] : memref<162xf32, #tpu.memory_space<smem>>
    %546 = vector.broadcast %545 : f32 to vector<2x256xf32>
    %547 = arith.mulf %540, %546 : vector<2x256xf32>
    %548 = arith.addf %523, %547 : vector<2x256xf32>
    %c61 = arith.constant 61 : index
    %549 = memref.load %arg1[%c61] : memref<162xf32, #tpu.memory_space<smem>>
    %550 = vector.broadcast %549 : f32 to vector<2x256xf32>
    %551 = arith.mulf %540, %550 : vector<2x256xf32>
    %552 = arith.addf %527, %551 : vector<2x256xf32>
    %c88 = arith.constant 88 : index
    %553 = memref.load %arg1[%c88] : memref<162xf32, #tpu.memory_space<smem>>
    %554 = vector.broadcast %553 : f32 to vector<2x256xf32>
    %555 = arith.mulf %540, %554 : vector<2x256xf32>
    %556 = arith.addf %531, %555 : vector<2x256xf32>
    %c115 = arith.constant 115 : index
    %557 = memref.load %arg1[%c115] : memref<162xf32, #tpu.memory_space<smem>>
    %558 = vector.broadcast %557 : f32 to vector<2x256xf32>
    %559 = arith.mulf %540, %558 : vector<2x256xf32>
    %560 = arith.addf %535, %559 : vector<2x256xf32>
    %c142 = arith.constant 142 : index
    %561 = memref.load %arg1[%c142] : memref<162xf32, #tpu.memory_space<smem>>
    %562 = vector.broadcast %561 : f32 to vector<2x256xf32>
    %563 = arith.mulf %540, %562 : vector<2x256xf32>
    %564 = arith.addf %539, %563 : vector<2x256xf32>
    %c223_i32_27 = arith.constant 223 : i32
    %565 = tpu.dynamic_rotate %3 by %c223_i32_27 dim 1 : vector<2x256xf32>, i32 -> vector<2x256xf32>
    %c16 = arith.constant 16 : index
    %566 = memref.load %arg1[%c16] : memref<162xf32, #tpu.memory_space<smem>>
    %567 = vector.broadcast %566 : f32 to vector<2x256xf32>
    %568 = arith.mulf %565, %567 : vector<2x256xf32>
    %569 = arith.addf %544, %568 : vector<2x256xf32>
    %c43 = arith.constant 43 : index
    %570 = memref.load %arg1[%c43] : memref<162xf32, #tpu.memory_space<smem>>
    %571 = vector.broadcast %570 : f32 to vector<2x256xf32>
    %572 = arith.mulf %565, %571 : vector<2x256xf32>
    %573 = arith.addf %548, %572 : vector<2x256xf32>
    %c70 = arith.constant 70 : index
    %574 = memref.load %arg1[%c70] : memref<162xf32, #tpu.memory_space<smem>>
    %575 = vector.broadcast %574 : f32 to vector<2x256xf32>
    %576 = arith.mulf %565, %575 : vector<2x256xf32>
    %577 = arith.addf %552, %576 : vector<2x256xf32>
    %c97 = arith.constant 97 : index
    %578 = memref.load %arg1[%c97] : memref<162xf32, #tpu.memory_space<smem>>
    %579 = vector.broadcast %578 : f32 to vector<2x256xf32>
    %580 = arith.mulf %565, %579 : vector<2x256xf32>
    %581 = arith.addf %556, %580 : vector<2x256xf32>
    %c124 = arith.constant 124 : index
    %582 = memref.load %arg1[%c124] : memref<162xf32, #tpu.memory_space<smem>>
    %583 = vector.broadcast %582 : f32 to vector<2x256xf32>
    %584 = arith.mulf %565, %583 : vector<2x256xf32>
    %585 = arith.addf %560, %584 : vector<2x256xf32>
    %c151 = arith.constant 151 : index
    %586 = memref.load %arg1[%c151] : memref<162xf32, #tpu.memory_space<smem>>
    %587 = vector.broadcast %586 : f32 to vector<2x256xf32>
    %588 = arith.mulf %565, %587 : vector<2x256xf32>
    %589 = arith.addf %564, %588 : vector<2x256xf32>
    %c223_i32_28 = arith.constant 223 : i32
    %590 = tpu.dynamic_rotate %5 by %c223_i32_28 dim 1 : vector<2x256xf32>, i32 -> vector<2x256xf32>
    %c25 = arith.constant 25 : index
    %591 = memref.load %arg1[%c25] : memref<162xf32, #tpu.memory_space<smem>>
    %592 = vector.broadcast %591 : f32 to vector<2x256xf32>
    %593 = arith.mulf %590, %592 : vector<2x256xf32>
    %594 = arith.addf %569, %593 : vector<2x256xf32>
    %c52 = arith.constant 52 : index
    %595 = memref.load %arg1[%c52] : memref<162xf32, #tpu.memory_space<smem>>
    %596 = vector.broadcast %595 : f32 to vector<2x256xf32>
    %597 = arith.mulf %590, %596 : vector<2x256xf32>
    %598 = arith.addf %573, %597 : vector<2x256xf32>
    %c79 = arith.constant 79 : index
    %599 = memref.load %arg1[%c79] : memref<162xf32, #tpu.memory_space<smem>>
    %600 = vector.broadcast %599 : f32 to vector<2x256xf32>
    %601 = arith.mulf %590, %600 : vector<2x256xf32>
    %602 = arith.addf %577, %601 : vector<2x256xf32>
    %c106 = arith.constant 106 : index
    %603 = memref.load %arg1[%c106] : memref<162xf32, #tpu.memory_space<smem>>
    %604 = vector.broadcast %603 : f32 to vector<2x256xf32>
    %605 = arith.mulf %590, %604 : vector<2x256xf32>
    %606 = arith.addf %581, %605 : vector<2x256xf32>
    %c133 = arith.constant 133 : index
    %607 = memref.load %arg1[%c133] : memref<162xf32, #tpu.memory_space<smem>>
    %608 = vector.broadcast %607 : f32 to vector<2x256xf32>
    %609 = arith.mulf %590, %608 : vector<2x256xf32>
    %610 = arith.addf %585, %609 : vector<2x256xf32>
    %c160 = arith.constant 160 : index
    %611 = memref.load %arg1[%c160] : memref<162xf32, #tpu.memory_space<smem>>
    %612 = vector.broadcast %611 : f32 to vector<2x256xf32>
    %613 = arith.mulf %590, %612 : vector<2x256xf32>
    %614 = arith.addf %589, %613 : vector<2x256xf32>
    %c222_i32 = arith.constant 222 : i32
    %615 = tpu.dynamic_rotate %1 by %c222_i32 dim 1 : vector<2x256xf32>, i32 -> vector<2x256xf32>
    %c8 = arith.constant 8 : index
    %616 = memref.load %arg1[%c8] : memref<162xf32, #tpu.memory_space<smem>>
    %617 = vector.broadcast %616 : f32 to vector<2x256xf32>
    %618 = arith.mulf %615, %617 : vector<2x256xf32>
    %619 = arith.addf %594, %618 : vector<2x256xf32>
    %c35 = arith.constant 35 : index
    %620 = memref.load %arg1[%c35] : memref<162xf32, #tpu.memory_space<smem>>
    %621 = vector.broadcast %620 : f32 to vector<2x256xf32>
    %622 = arith.mulf %615, %621 : vector<2x256xf32>
    %623 = arith.addf %598, %622 : vector<2x256xf32>
    %c62 = arith.constant 62 : index
    %624 = memref.load %arg1[%c62] : memref<162xf32, #tpu.memory_space<smem>>
    %625 = vector.broadcast %624 : f32 to vector<2x256xf32>
    %626 = arith.mulf %615, %625 : vector<2x256xf32>
    %627 = arith.addf %602, %626 : vector<2x256xf32>
    %c89 = arith.constant 89 : index
    %628 = memref.load %arg1[%c89] : memref<162xf32, #tpu.memory_space<smem>>
    %629 = vector.broadcast %628 : f32 to vector<2x256xf32>
    %630 = arith.mulf %615, %629 : vector<2x256xf32>
    %631 = arith.addf %606, %630 : vector<2x256xf32>
    %c116 = arith.constant 116 : index
    %632 = memref.load %arg1[%c116] : memref<162xf32, #tpu.memory_space<smem>>
    %633 = vector.broadcast %632 : f32 to vector<2x256xf32>
    %634 = arith.mulf %615, %633 : vector<2x256xf32>
    %635 = arith.addf %610, %634 : vector<2x256xf32>
    %c143 = arith.constant 143 : index
    %636 = memref.load %arg1[%c143] : memref<162xf32, #tpu.memory_space<smem>>
    %637 = vector.broadcast %636 : f32 to vector<2x256xf32>
    %638 = arith.mulf %615, %637 : vector<2x256xf32>
    %639 = arith.addf %614, %638 : vector<2x256xf32>
    %c222_i32_29 = arith.constant 222 : i32
    %640 = tpu.dynamic_rotate %3 by %c222_i32_29 dim 1 : vector<2x256xf32>, i32 -> vector<2x256xf32>
    %c17 = arith.constant 17 : index
    %641 = memref.load %arg1[%c17] : memref<162xf32, #tpu.memory_space<smem>>
    %642 = vector.broadcast %641 : f32 to vector<2x256xf32>
    %643 = arith.mulf %640, %642 : vector<2x256xf32>
    %644 = arith.addf %619, %643 : vector<2x256xf32>
    %c44 = arith.constant 44 : index
    %645 = memref.load %arg1[%c44] : memref<162xf32, #tpu.memory_space<smem>>
    %646 = vector.broadcast %645 : f32 to vector<2x256xf32>
    %647 = arith.mulf %640, %646 : vector<2x256xf32>
    %648 = arith.addf %623, %647 : vector<2x256xf32>
    %c71 = arith.constant 71 : index
    %649 = memref.load %arg1[%c71] : memref<162xf32, #tpu.memory_space<smem>>
    %650 = vector.broadcast %649 : f32 to vector<2x256xf32>
    %651 = arith.mulf %640, %650 : vector<2x256xf32>
    %652 = arith.addf %627, %651 : vector<2x256xf32>
    %c98 = arith.constant 98 : index
    %653 = memref.load %arg1[%c98] : memref<162xf32, #tpu.memory_space<smem>>
    %654 = vector.broadcast %653 : f32 to vector<2x256xf32>
    %655 = arith.mulf %640, %654 : vector<2x256xf32>
    %656 = arith.addf %631, %655 : vector<2x256xf32>
    %c125 = arith.constant 125 : index
    %657 = memref.load %arg1[%c125] : memref<162xf32, #tpu.memory_space<smem>>
    %658 = vector.broadcast %657 : f32 to vector<2x256xf32>
    %659 = arith.mulf %640, %658 : vector<2x256xf32>
    %660 = arith.addf %635, %659 : vector<2x256xf32>
    %c152 = arith.constant 152 : index
    %661 = memref.load %arg1[%c152] : memref<162xf32, #tpu.memory_space<smem>>
    %662 = vector.broadcast %661 : f32 to vector<2x256xf32>
    %663 = arith.mulf %640, %662 : vector<2x256xf32>
    %664 = arith.addf %639, %663 : vector<2x256xf32>
    %c222_i32_30 = arith.constant 222 : i32
    %665 = tpu.dynamic_rotate %5 by %c222_i32_30 dim 1 : vector<2x256xf32>, i32 -> vector<2x256xf32>
    %c26 = arith.constant 26 : index
    %666 = memref.load %arg1[%c26] : memref<162xf32, #tpu.memory_space<smem>>
    %667 = vector.broadcast %666 : f32 to vector<2x256xf32>
    %668 = arith.mulf %665, %667 : vector<2x256xf32>
    %669 = arith.addf %644, %668 : vector<2x256xf32>
    %c53 = arith.constant 53 : index
    %670 = memref.load %arg1[%c53] : memref<162xf32, #tpu.memory_space<smem>>
    %671 = vector.broadcast %670 : f32 to vector<2x256xf32>
    %672 = arith.mulf %665, %671 : vector<2x256xf32>
    %673 = arith.addf %648, %672 : vector<2x256xf32>
    %c80 = arith.constant 80 : index
    %674 = memref.load %arg1[%c80] : memref<162xf32, #tpu.memory_space<smem>>
    %675 = vector.broadcast %674 : f32 to vector<2x256xf32>
    %676 = arith.mulf %665, %675 : vector<2x256xf32>
    %677 = arith.addf %652, %676 : vector<2x256xf32>
    %c107 = arith.constant 107 : index
    %678 = memref.load %arg1[%c107] : memref<162xf32, #tpu.memory_space<smem>>
    %679 = vector.broadcast %678 : f32 to vector<2x256xf32>
    %680 = arith.mulf %665, %679 : vector<2x256xf32>
    %681 = arith.addf %656, %680 : vector<2x256xf32>
    %c134 = arith.constant 134 : index
    %682 = memref.load %arg1[%c134] : memref<162xf32, #tpu.memory_space<smem>>
    %683 = vector.broadcast %682 : f32 to vector<2x256xf32>
    %684 = arith.mulf %665, %683 : vector<2x256xf32>
    %685 = arith.addf %660, %684 : vector<2x256xf32>
    %c161 = arith.constant 161 : index
    %686 = memref.load %arg1[%c161] : memref<162xf32, #tpu.memory_space<smem>>
    %687 = vector.broadcast %686 : f32 to vector<2x256xf32>
    %688 = arith.mulf %665, %687 : vector<2x256xf32>
    %689 = arith.addf %664, %688 : vector<2x256xf32>
    %c0_31 = arith.constant 0 : index
    %c0_32 = arith.constant 0 : index
    %c0_33 = arith.constant 0 : index
    %690 = vector.load %arg4[%c0_31, %c0_32, %c0_33] : memref<6x2x256xf32, #tpu.memory_space<vmem>>, vector<1x2x256xf32>
    %691 = vector.shape_cast %690 : vector<1x2x256xf32> to vector<2x256xf32>
    %692 = vector.shape_cast %669 : vector<2x256xf32> to vector<1x2x256xf32>
    tpu.vector_store %arg4[%c0_31, %c0_32, %c0_33], %692 {strides = array<i32>} : memref<6x2x256xf32, #tpu.memory_space<vmem>>, vector<1x2x256xf32>,
    %c1_34 = arith.constant 1 : index
    %c0_35 = arith.constant 0 : index
    %c0_36 = arith.constant 0 : index
    %693 = vector.load %arg4[%c1_34, %c0_35, %c0_36] : memref<6x2x256xf32, #tpu.memory_space<vmem>>, vector<1x2x256xf32>
    %694 = vector.shape_cast %693 : vector<1x2x256xf32> to vector<2x256xf32>
    %695 = vector.shape_cast %673 : vector<2x256xf32> to vector<1x2x256xf32>
    tpu.vector_store %arg4[%c1_34, %c0_35, %c0_36], %695 {strides = array<i32>} : memref<6x2x256xf32, #tpu.memory_space<vmem>>, vector<1x2x256xf32>,
    %c2_37 = arith.constant 2 : index
    %c0_38 = arith.constant 0 : index
    %c0_39 = arith.constant 0 : index
    %696 = vector.load %arg4[%c2_37, %c0_38, %c0_39] : memref<6x2x256xf32, #tpu.memory_space<vmem>>, vector<1x2x256xf32>
    %697 = vector.shape_cast %696 : vector<1x2x256xf32> to vector<2x256xf32>
    %698 = vector.shape_cast %677 : vector<2x256xf32> to vector<1x2x256xf32>
    tpu.vector_store %arg4[%c2_37, %c0_38, %c0_39], %698 {strides = array<i32>} : memref<6x2x256xf32, #tpu.memory_space<vmem>>, vector<1x2x256xf32>,
    %c3_40 = arith.constant 3 : index
    %c0_41 = arith.constant 0 : index
    %c0_42 = arith.constant 0 : index
    %699 = vector.load %arg4[%c3_40, %c0_41, %c0_42] : memref<6x2x256xf32, #tpu.memory_space<vmem>>, vector<1x2x256xf32>
    %700 = vector.shape_cast %699 : vector<1x2x256xf32> to vector<2x256xf32>
    %701 = vector.shape_cast %681 : vector<2x256xf32> to vector<1x2x256xf32>
    tpu.vector_store %arg4[%c3_40, %c0_41, %c0_42], %701 {strides = array<i32>} : memref<6x2x256xf32, #tpu.memory_space<vmem>>, vector<1x2x256xf32>,
    %c4_43 = arith.constant 4 : index
    %c0_44 = arith.constant 0 : index
    %c0_45 = arith.constant 0 : index
    %702 = vector.load %arg4[%c4_43, %c0_44, %c0_45] : memref<6x2x256xf32, #tpu.memory_space<vmem>>, vector<1x2x256xf32>
    %703 = vector.shape_cast %702 : vector<1x2x256xf32> to vector<2x256xf32>
    %704 = vector.shape_cast %685 : vector<2x256xf32> to vector<1x2x256xf32>
    tpu.vector_store %arg4[%c4_43, %c0_44, %c0_45], %704 {strides = array<i32>} : memref<6x2x256xf32, #tpu.memory_space<vmem>>, vector<1x2x256xf32>,
    %c5_46 = arith.constant 5 : index
    %c0_47 = arith.constant 0 : index
    %c0_48 = arith.constant 0 : index
    %705 = vector.load %arg4[%c5_46, %c0_47, %c0_48] : memref<6x2x256xf32, #tpu.memory_space<vmem>>, vector<1x2x256xf32>
    %706 = vector.shape_cast %705 : vector<1x2x256xf32> to vector<2x256xf32>
    %707 = vector.shape_cast %689 : vector<2x256xf32> to vector<1x2x256xf32>
    tpu.vector_store %arg4[%c5_46, %c0_47, %c0_48], %707 {strides = array<i32>} : memref<6x2x256xf32, #tpu.memory_space<vmem>>, vector<1x2x256xf32>,
    return
  }
  func.func @transform_0(%arg0: i32) -> i32 {
    %c0_i32 = arith.constant 0 : i32
    %c0_i32_0 = arith.constant 0 : i32
    return %c0_i32 : i32
  }
  func.func @transform_1(%arg0: i32) -> i32 {
    %c0_i32 = arith.constant 0 : i32
    %c0_i32_0 = arith.constant 0 : i32
    return %c0_i32 : i32
  }
  func.func @transform_2(%arg0: i32) -> (i32, i32, i32) {
    %c0_i32 = arith.constant 0 : i32
    %c0_i32_0 = arith.constant 0 : i32
    %c0_i32_1 = arith.constant 0 : i32
    return %c0_i32, %arg0, %c0_i32_0 : i32, i32, i32
  }
  func.func @transform_3(%arg0: i32) -> (i32, i32, i32) {
    %c0_i32 = arith.constant 0 : i32
    %c0_i32_0 = arith.constant 0 : i32
    %c0_i32_1 = arith.constant 0 : i32
    return %c0_i32, %arg0, %c0_i32_0 : i32, i32, i32
  }
}

</mosaic_0001>

<llo_original>
// kernel: li_xiaoning_forward.1
$region0: #{li_xiaoning_forward.1}
  #allocation0 [shape = 'u32[]', space=smem, size = 0x4, offset = 0x4, fixed_abs, tag = 'smem constant byte address 0x4 - core index']
  #allocation1 [shape = 'u32[144,128]{1,0:T(1,128)}', space=vmem, size = 0x12000, scoped, tag = 'internal scratch']
  %s0 = inlined_call_operand.vmem [shape: f32[162], index: 0, kind: input, shape index: {}]
  %s1 = inlined_call_operand.vmem [shape: f32[6], index: 1, kind: input, shape index: {}]
  %s2 = inlined_call_operand.vmem [shape: f32[3,2,256], index: 2, kind: input, shape index: {}]
  %s3 = inlined_call_operand.vmem [shape: f32[6,2,256], index: 3, kind: output, shape index: {}]
  %s4 = sld [smem:[#allocation0]]
  $region30: #{li_xiaoning_forward.1} parent=0
    _
  %s6 = ssub.s32 1, %s4
  %s7 = scalar_select 0, %s6, %s4
  $region1: #{li_xiaoning_forward.1} parent=0
    #allocation2 [shape = 'u8[1024]{0}', space=smem, size = 0x400, scoped, tag = 'input window, operand 0, single buffered']
    #allocation3 [shape = 's32[1]{0}', space=sflag, size = 0x4, scoped, tag = 'scoped memory for li_xiaoning_forward.1']
    #allocation4 [shape = 'u8[512]{0}', space=smem, size = 0x200, scoped, tag = 'input window, operand 1, single buffered']
    #allocation5 [shape = 's32[1]{0}', space=sflag, size = 0x4, scoped, tag = 'scoped memory for li_xiaoning_forward.1']
    %8 = vsyncpa [#allocation3], 0
    %9 = vsyncpa [#allocation5], 0
    // Predicated region
    $region2: #{li_xiaoning_forward.1} parent=1 // pred_check
      _
    $region3: #{li_xiaoning_forward.1} parent=1 // pred_check_branch
      %11 = sbr.rel (0) target = $region5
    $region4: #{li_xiaoning_forward.1} parent=1 // pred_region
      %s13 = ssub.s32 32, 32
      %14 = vsyncadd [#allocation3], %s13
      %s16 = sshll.u32 %s0, 4
      %s17 = int_to_ptr.vmem [resolvable:$true] %s16
      %19 = dma.vmem_to_smem %s17, 32, [#allocation2], [#allocation3]
    $region5: #{li_xiaoning_forward.1} parent=1 // pred_fallthru
      _
    // Predicated region
    $region6: #{li_xiaoning_forward.1} parent=1 // pred_check
      _
    $region7: #{li_xiaoning_forward.1} parent=1 // pred_check_branch
      %21 = sbr.rel (0) target = $region9
    $region8: #{li_xiaoning_forward.1} parent=1 // pred_region
      %s23 = ssub.s32 16, 16
      %24 = vsyncadd [#allocation5], %s23
      %s26 = sshll.u32 %s1, 4
      %s27 = int_to_ptr.vmem [resolvable:$true] %s26
      %29 = dma.vmem_to_smem %s27, 16, [#allocation4], [#allocation5]
    $region9: #{li_xiaoning_forward.1} parent=1 // pred_fallthru
      _
    // Predicated region
    $region10: #{li_xiaoning_forward.1} parent=1 // pred_check
      _
    $region11: #{li_xiaoning_forward.1} parent=1 // pred_check_branch
      %31 = sbr.rel (0) target = $region13
    $region12: #{li_xiaoning_forward.1} parent=1 // pred_region
      _
    $region13: #{li_xiaoning_forward.1} parent=1 // pred_fallthru
      _
    // Predicated region
    $region14: #{li_xiaoning_forward.1} parent=1 // pred_check
      _
    $region15: #{li_xiaoning_forward.1} parent=1 // pred_check_branch
      %33 = sbr.rel (0) target = $region17
    $region16: #{li_xiaoning_forward.1} parent=1 // pred_region
      %34 = dma.done [#allocation3], 32
    $region17: #{li_xiaoning_forward.1} parent=1 // pred_fallthru
      _
    // Predicated region
    $region18: #{li_xiaoning_forward.1} parent=1 // pred_check
      _
    $region19: #{li_xiaoning_forward.1} parent=1 // pred_check_branch
      %36 = sbr.rel (0) target = $region21
    $region20: #{li_xiaoning_forward.1} parent=1 // pred_region
      %37 = dma.done [#allocation5], 16
    $region21: #{li_xiaoning_forward.1} parent=1 // pred_fallthru
      _
    %38 = sfence
    %v39 = vld [vmem:[%s2] sm:$0xf]
    %s40 = scalar_lea.vmem %s2, 4
    %v41 = vld [vmem:[%s40] sm:$0xf]
    %s42 = scalar_lea.vmem %s2, 8
    %v43 = vld [vmem:[%s42] sm:$0xf]
    %s44 = sld [smem:[#allocation4]]
    %v45 = vstv %s44
    %s46 = sld [smem:[#allocation4 + $0x1]]
    %v47 = vstv %s46
    %s48 = sld [smem:[#allocation4 + $0x2]]
    %v49 = vstv %s48
    %s50 = sld [smem:[#allocation4 + $0x3]]
    %v51 = vstv %s50
    %s52 = sld [smem:[#allocation4 + $0x4]]
    %v53 = vstv %s52
    %s54 = sld [smem:[#allocation4 + $0x5]]
    %v55 = vstv %s54
    %s56 = sld [smem:[#allocation2]]
    %v57 = vstv %s56
    %v58 = vmul.f32 %v39, %v57
    %v59 = vadd.f32 %v45, %v58
    %s60 = sld [smem:[#allocation2 + $0x1b]]
    %v61 = vstv %s60
    %v62 = vmul.f32 %v39, %v61
    %v63 = vadd.f32 %v47, %v62
    %s64 = sld [smem:[#allocation2 + $0x36]]
    %v65 = vstv %s64
    %v66 = vmul.f32 %v39, %v65
    %v67 = vadd.f32 %v49, %v66
    %s68 = sld [smem:[#allocation2 + $0x51]]
    %v69 = vstv %s68
    %v70 = vmul.f32 %v39, %v69
    %v71 = vadd.f32 %v51, %v70
    %s72 = sld [smem:[#allocation2 + $0x6c]]
    %v73 = vstv %s72
    %v74 = vmul.f32 %v39, %v73
    %v75 = vadd.f32 %v53, %v74
    %s76 = sld [smem:[#allocation2 + $0x87]]
    %v77 = vstv %s76
    %v78 = vmul.f32 %v39, %v77
    %v79 = vadd.f32 %v55, %v78
    %s80 = sld [smem:[#allocation2 + $0x9]]
    %v81 = vstv %s80
    %v82 = vmul.f32 %v41, %v81
    %v83 = vadd.f32 %v59, %v82
    %s84 = sld [smem:[#allocation2 + $0x24]]
    %v85 = vstv %s84
    %v86 = vmul.f32 %v41, %v85
    %v87 = vadd.f32 %v63, %v86
    %s88 = sld [smem:[#allocation2 + $0x3f]]
    %v89 = vstv %s88
    %v90 = vmul.f32 %v41, %v89
    %v91 = vadd.f32 %v67, %v90
    %s92 = sld [smem:[#allocation2 + $0x5a]]
    %v93 = vstv %s92
    %v94 = vmul.f32 %v41, %v93
    %v95 = vadd.f32 %v71, %v94
    %s96 = sld [smem:[#allocation2 + $0x75]]
    %v97 = vstv %s96
    %v98 = vmul.f32 %v41, %v97
    %v99 = vadd.f32 %v75, %v98
    %s100 = sld [smem:[#allocation2 + $0x90]]
    %v101 = vstv %s100
    %v102 = vmul.f32 %v41, %v101
    %v103 = vadd.f32 %v79, %v102
    %s104 = sld [smem:[#allocation2 + $0x12]]
    %v105 = vstv %s104
    %v106 = vmul.f32 %v43, %v105
    %v107 = vadd.f32 %v83, %v106
    %s108 = sld [smem:[#allocation2 + $0x2d]]
    %v109 = vstv %s108
    %v110 = vmul.f32 %v43, %v109
    %v111 = vadd.f32 %v87, %v110
    %s112 = sld [smem:[#allocation2 + $0x48]]
    %v113 = vstv %s112
    %v114 = vmul.f32 %v43, %v113
    %v115 = vadd.f32 %v91, %v114
    %s116 = sld [smem:[#allocation2 + $0x63]]
    %v117 = vstv %s116
    %v118 = vmul.f32 %v43, %v117
    %v119 = vadd.f32 %v95, %v118
    %s120 = sld [smem:[#allocation2 + $0x7e]]
    %v121 = vstv %s120
    %v122 = vmul.f32 %v43, %v121
    %v123 = vadd.f32 %v99, %v122
    %s124 = sld [smem:[#allocation2 + $0x99]]
    %v125 = vstv %s124
    %v126 = vmul.f32 %v43, %v125
    %v127 = vadd.f32 %v103, %v126
    %v130 = vunpack.c.l.s4 1983009808
    %v131 = vunpack.c.0.s8 %v130
    %v132 = vlaneseq
    %v133 = vshrl.u32 %v132, 7
    %v134 = vsub.s32 %v131, %v133
    %v135 = vrot.slane %v39, %v134
    %v136 = vcombine.high %v135, %v135
    %139 = vrot.lane.b32.xlu0 %v135, 127
    %v140 = vpop.permute.xlu0 %139
    %141 = vrot.lane.b32.xlu0 %v136, 127
    %v142 = vpop.permute.xlu0 %141
    %v143 = vlaneseq
    %v144 = vand.u32 %v143, 127
    %vm145 = vcmp.lt.s32.totalorder %v144, 127
    %v146 = vsel %vm145, %v140, %v142
    %v147 = vsel %vm145, %v142, %v140
    %s148 = sld [smem:[#allocation2 + $0x1]]
    %v149 = vstv %s148
    %v150 = vmul.f32 %v146, %v149
    %v151 = vmul.f32 %v147, %v149
    %v154 = vcombine.low %v150, %v151
    %v156 = vunpack.c.l.s4 1983009808
    %v157 = vunpack.c.0.s8 %v156
    %v158 = vlaneseq
    %v159 = vshrl.u32 %v158, 7
    %v160 = vsub.s32 %v157, %v159
    %v161 = vrot.slane %v154, %v160
    %v163 = vadd.f32 %v107, %v161
    %s164 = sld [smem:[#allocation2 + $0x1c]]
    %v165 = vstv %s164
    %v166 = vmul.f32 %v146, %v165
    %v167 = vmul.f32 %v147, %v165
    %v170 = vcombine.low %v166, %v167
    %v172 = vunpack.c.l.s4 1983009808
    %v173 = vunpack.c.0.s8 %v172
    %v174 = vlaneseq
    %v175 = vshrl.u32 %v174, 7
    %v176 = vsub.s32 %v173, %v175
    %v177 = vrot.slane %v170, %v176
    %v179 = vadd.f32 %v111, %v177
    %s180 = sld [smem:[#allocation2 + $0x37]]
    %v181 = vstv %s180
    %v182 = vmul.f32 %v146, %v181
    %v183 = vmul.f32 %v147, %v181
    %v186 = vcombine.low %v182, %v183
    %v188 = vunpack.c.l.s4 1983009808
    %v189 = vunpack.c.0.s8 %v188
    %v190 = vlaneseq
    %v191 = vshrl.u32 %v190, 7
    %v192 = vsub.s32 %v189, %v191
    %v193 = vrot.slane %v186, %v192
    %v195 = vadd.f32 %v115, %v193
    %s196 = sld [smem:[#allocation2 + $0x52]]
    %v197 = vstv %s196
    %v198 = vmul.f32 %v146, %v197
    %v199 = vmul.f32 %v147, %v197
    %v202 = vcombine.low %v198, %v199
    %v204 = vunpack.c.l.s4 1983009808
    %v205 = vunpack.c.0.s8 %v204
    %v206 = vlaneseq
    %v207 = vshrl.u32 %v206, 7
    %v208 = vsub.s32 %v205, %v207
    %v209 = vrot.slane %v202, %v208
    %v211 = vadd.f32 %v119, %v209
    %s212 = sld [smem:[#allocation2 + $0x6d]]
    %v213 = vstv %s212
    %v214 = vmul.f32 %v146, %v213
    %v215 = vmul.f32 %v147, %v213
    %v218 = vcombine.low %v214, %v215
    %v220 = vunpack.c.l.s4 1983009808
    %v221 = vunpack.c.0.s8 %v220
    %v222 = vlaneseq
    %v223 = vshrl.u32 %v222, 7
    %v224 = vsub.s32 %v221, %v223
    %v225 = vrot.slane %v218, %v224
    %v227 = vadd.f32 %v123, %v225
    %s228 = sld [smem:[#allocation2 + $0x88]]
    %v229 = vstv %s228
    %v230 = vmul.f32 %v146, %v229
    %v231 = vmul.f32 %v147, %v229
    %v234 = vcombine.low %v230, %v231
    %v236 = vunpack.c.l.s4 1983009808
    %v237 = vunpack.c.0.s8 %v236
    %v238 = vlaneseq
    %v239 = vshrl.u32 %v238, 7
    %v240 = vsub.s32 %v237, %v239
    %v241 = vrot.slane %v234, %v240
    %v243 = vadd.f32 %v127, %v241
    %v246 = vunpack.c.l.s4 1983009808
    %v247 = vunpack.c.0.s8 %v246
    %v248 = vlaneseq
    %v249 = vshrl.u32 %v248, 7
    %v250 = vsub.s32 %v247, %v249
    %v251 = vrot.slane %v41, %v250
    %v252 = vcombine.high %v251, %v251
    %255 = vrot.lane.b32.xlu0 %v251, 127
    %v256 = vpop.permute.xlu0 %255
    %257 = vrot.lane.b32.xlu0 %v252, 127
    %v258 = vpop.permute.xlu0 %257
    %v259 = vsel %vm145, %v256, %v258
    %v260 = vsel %vm145, %v258, %v256
    %s261 = sld [smem:[#allocation2 + $0xa]]
    %v262 = vstv %s261
    %v263 = vmul.f32 %v259, %v262
    %v264 = vmul.f32 %v260, %v262
    %v267 = vcombine.low %v263, %v264
    %v269 = vunpack.c.l.s4 1983009808
    %v270 = vunpack.c.0.s8 %v269
    %v271 = vlaneseq
    %v272 = vshrl.u32 %v271, 7
    %v273 = vsub.s32 %v270, %v272
    %v274 = vrot.slane %v267, %v273
    %v276 = vadd.f32 %v163, %v274
    %s277 = sld [smem:[#allocation2 + $0x25]]
    %v278 = vstv %s277
    %v279 = vmul.f32 %v259, %v278
    %v280 = vmul.f32 %v260, %v278
    %v283 = vcombine.low %v279, %v280
    %v285 = vunpack.c.l.s4 1983009808
    %v286 = vunpack.c.0.s8 %v285
    %v287 = vlaneseq
    %v288 = vshrl.u32 %v287, 7
    %v289 = vsub.s32 %v286, %v288
    %v290 = vrot.slane %v283, %v289
    %v292 = vadd.f32 %v179, %v290
    %s293 = sld [smem:[#allocation2 + $0x40]]
    %v294 = vstv %s293
    %v295 = vmul.f32 %v259, %v294
    %v296 = vmul.f32 %v260, %v294
    %v299 = vcombine.low %v295, %v296
    %v301 = vunpack.c.l.s4 1983009808
    %v302 = vunpack.c.0.s8 %v301
    %v303 = vlaneseq
    %v304 = vshrl.u32 %v303, 7
    %v305 = vsub.s32 %v302, %v304
    %v306 = vrot.slane %v299, %v305
    %v308 = vadd.f32 %v195, %v306
    %s309 = sld [smem:[#allocation2 + $0x5b]]
    %v310 = vstv %s309
    %v311 = vmul.f32 %v259, %v310
    %v312 = vmul.f32 %v260, %v310
    %v315 = vcombine.low %v311, %v312
    %v317 = vunpack.c.l.s4 1983009808
    %v318 = vunpack.c.0.s8 %v317
    %v319 = vlaneseq
    %v320 = vshrl.u32 %v319, 7
    %v321 = vsub.s32 %v318, %v320
    %v322 = vrot.slane %v315, %v321
    %v324 = vadd.f32 %v211, %v322
    %s325 = sld [smem:[#allocation2 + $0x76]]
    %v326 = vstv %s325
    %v327 = vmul.f32 %v259, %v326
    %v328 = vmul.f32 %v260, %v326
    %v331 = vcombine.low %v327, %v328
    %v333 = vunpack.c.l.s4 1983009808
    %v334 = vunpack.c.0.s8 %v333
    %v335 = vlaneseq
    %v336 = vshrl.u32 %v335, 7
    %v337 = vsub.s32 %v334, %v336
    %v338 = vrot.slane %v331, %v337
    %v340 = vadd.f32 %v227, %v338
    %s341 = sld [smem:[#allocation2 + $0x91]]
    %v342 = vstv %s341
    %v343 = vmul.f32 %v259, %v342
    %v344 = vmul.f32 %v260, %v342
    %v347 = vcombine.low %v343, %v344
    %v349 = vunpack.c.l.s4 1983009808
    %v350 = vunpack.c.0.s8 %v349
    %v351 = vlaneseq
    %v352 = vshrl.u32 %v351, 7
    %v353 = vsub.s32 %v350, %v352
    %v354 = vrot.slane %v347, %v353
    %v356 = vadd.f32 %v243, %v354
    %v359 = vunpack.c.l.s4 1983009808
    %v360 = vunpack.c.0.s8 %v359
    %v361 = vlaneseq
    %v362 = vshrl.u32 %v361, 7
    %v363 = vsub.s32 %v360, %v362
    %v364 = vrot.slane %v43, %v363
    %v365 = vcombine.high %v364, %v364
    %368 = vrot.lane.b32.xlu0 %v364, 127
    %v369 = vpop.permute.xlu0 %368
    %370 = vrot.lane.b32.xlu0 %v365, 127
    %v371 = vpop.permute.xlu0 %370
    %v372 = vsel %vm145, %v369, %v371
    %v373 = vsel %vm145, %v371, %v369
    %s374 = sld [smem:[#allocation2 + $0x13]]
    %v375 = vstv %s374
    %v376 = vmul.f32 %v372, %v375
    %v377 = vmul.f32 %v373, %v375
    %v380 = vcombine.low %v376, %v377
    %v382 = vunpack.c.l.s4 1983009808
    %v383 = vunpack.c.0.s8 %v382
    %v384 = vlaneseq
    %v385 = vshrl.u32 %v384, 7
    %v386 = vsub.s32 %v383, %v385
    %v387 = vrot.slane %v380, %v386
    %v389 = vadd.f32 %v276, %v387
    %s390 = sld [smem:[#allocation2 + $0x2e]]
    %v391 = vstv %s390
    %v392 = vmul.f32 %v372, %v391
    %v393 = vmul.f32 %v373, %v391
    %v396 = vcombine.low %v392, %v393
    %v398 = vunpack.c.l.s4 1983009808
    %v399 = vunpack.c.0.s8 %v398
    %v400 = vlaneseq
    %v401 = vshrl.u32 %v400, 7
    %v402 = vsub.s32 %v399, %v401
    %v403 = vrot.slane %v396, %v402
    %v405 = vadd.f32 %v292, %v403
    %s406 = sld [smem:[#allocation2 + $0x49]]
    %v407 = vstv %s406
    %v408 = vmul.f32 %v372, %v407
    %v409 = vmul.f32 %v373, %v407
    %v412 = vcombine.low %v408, %v409
    %v414 = vunpack.c.l.s4 1983009808
    %v415 = vunpack.c.0.s8 %v414
    %v416 = vlaneseq
    %v417 = vshrl.u32 %v416, 7
    %v418 = vsub.s32 %v415, %v417
    %v419 = vrot.slane %v412, %v418
    %v421 = vadd.f32 %v308, %v419
    %s422 = sld [smem:[#allocation2 + $0x64]]
    %v423 = vstv %s422
    %v424 = vmul.f32 %v372, %v423
    %v425 = vmul.f32 %v373, %v423
    %v428 = vcombine.low %v424, %v425
    %v430 = vunpack.c.l.s4 1983009808
    %v431 = vunpack.c.0.s8 %v430
    %v432 = vlaneseq
    %v433 = vshrl.u32 %v432, 7
    %v434 = vsub.s32 %v431, %v433
    %v435 = vrot.slane %v428, %v434
    %v437 = vadd.f32 %v324, %v435
    %s438 = sld [smem:[#allocation2 + $0x7f]]
    %v439 = vstv %s438
    %v440 = vmul.f32 %v372, %v439
    %v441 = vmul.f32 %v373, %v439
    %v444 = vcombine.low %v440, %v441
    %v446 = vunpack.c.l.s4 1983009808
    %v447 = vunpack.c.0.s8 %v446
    %v448 = vlaneseq
    %v449 = vshrl.u32 %v448, 7
    %v450 = vsub.s32 %v447, %v449
    %v451 = vrot.slane %v444, %v450
    %v453 = vadd.f32 %v340, %v451
    %s454 = sld [smem:[#allocation2 + $0x9a]]
    %v455 = vstv %s454
    %v456 = vmul.f32 %v372, %v455
    %v457 = vmul.f32 %v373, %v455
    %v460 = vcombine.low %v456, %v457
    %v462 = vunpack.c.l.s4 1983009808
    %v463 = vunpack.c.0.s8 %v462
    %v464 = vlaneseq
    %v465 = vshrl.u32 %v464, 7
    %v466 = vsub.s32 %v463, %v465
    %v467 = vrot.slane %v460, %v466
    %v469 = vadd.f32 %v356, %v467
    %470 = vrot.lane.b32.xlu0 %v135, 126
    %v471 = vpop.permute.xlu0 %470
    %472 = vrot.lane.b32.xlu0 %v136, 126
    %v473 = vpop.permute.xlu0 %472
    %vm474 = vcmp.lt.s32.totalorder %v144, 126
    %v475 = vsel %vm474, %v471, %v473
    %v476 = vsel %vm474, %v473, %v471
    %s477 = sld [smem:[#allocation2 + $0x2]]
    %v478 = vstv %s477
    %v479 = vmul.f32 %v475, %v478
    %v480 = vmul.f32 %v476, %v478
    %v483 = vcombine.low %v479, %v480
    %v485 = vunpack.c.l.s4 1983009808
    %v486 = vunpack.c.0.s8 %v485
    %v487 = vlaneseq
    %v488 = vshrl.u32 %v487, 7
    %v489 = vsub.s32 %v486, %v488
    %v490 = vrot.slane %v483, %v489
    %v492 = vadd.f32 %v389, %v490
    %s493 = sld [smem:[#allocation2 + $0x1d]]
    %v494 = vstv %s493
    %v495 = vmul.f32 %v475, %v494
    %v496 = vmul.f32 %v476, %v494
    %v499 = vcombine.low %v495, %v496
    %v501 = vunpack.c.l.s4 1983009808
    %v502 = vunpack.c.0.s8 %v501
    %v503 = vlaneseq
    %v504 = vshrl.u32 %v503, 7
    %v505 = vsub.s32 %v502, %v504
    %v506 = vrot.slane %v499, %v505
    %v508 = vadd.f32 %v405, %v506
    %s509 = sld [smem:[#allocation2 + $0x38]]
    %v510 = vstv %s509
    %v511 = vmul.f32 %v475, %v510
    %v512 = vmul.f32 %v476, %v510
    %v515 = vcombine.low %v511, %v512
    %v517 = vunpack.c.l.s4 1983009808
    %v518 = vunpack.c.0.s8 %v517
    %v519 = vlaneseq
    %v520 = vshrl.u32 %v519, 7
    %v521 = vsub.s32 %v518, %v520
    %v522 = vrot.slane %v515, %v521
    %v524 = vadd.f32 %v421, %v522
    %s525 = sld [smem:[#allocation2 + $0x53]]
    %v526 = vstv %s525
    %v527 = vmul.f32 %v475, %v526
    %v528 = vmul.f32 %v476, %v526
    %v531 = vcombine.low %v527, %v528
    %v533 = vunpack.c.l.s4 1983009808
    %v534 = vunpack.c.0.s8 %v533
    %v535 = vlaneseq
    %v536 = vshrl.u32 %v535, 7
    %v537 = vsub.s32 %v534, %v536
    %v538 = vrot.slane %v531, %v537
    %v540 = vadd.f32 %v437, %v538
    %s541 = sld [smem:[#allocation2 + $0x6e]]
    %v542 = vstv %s541
    %v543 = vmul.f32 %v475, %v542
    %v544 = vmul.f32 %v476, %v542
    %v547 = vcombine.low %v543, %v544
    %v549 = vunpack.c.l.s4 1983009808
    %v550 = vunpack.c.0.s8 %v549
    %v551 = vlaneseq
    %v552 = vshrl.u32 %v551, 7
    %v553 = vsub.s32 %v550, %v552
    %v554 = vrot.slane %v547, %v553
    %v556 = vadd.f32 %v453, %v554
    %s557 = sld [smem:[#allocation2 + $0x89]]
    %v558 = vstv %s557
    %v559 = vmul.f32 %v475, %v558
    %v560 = vmul.f32 %v476, %v558
    %v563 = vcombine.low %v559, %v560
    %v565 = vunpack.c.l.s4 1983009808
    %v566 = vunpack.c.0.s8 %v565
    %v567 = vlaneseq
    %v568 = vshrl.u32 %v567, 7
    %v569 = vsub.s32 %v566, %v568
    %v570 = vrot.slane %v563, %v569
    %v572 = vadd.f32 %v469, %v570
    %573 = vrot.lane.b32.xlu0 %v251, 126
    %v574 = vpop.permute.xlu0 %573
    %575 = vrot.lane.b32.xlu0 %v252, 126
    %v576 = vpop.permute.xlu0 %575
    %v577 = vsel %vm474, %v574, %v576
    %v578 = vsel %vm474, %v576, %v574
    %s579 = sld [smem:[#allocation2 + $0xb]]
    %v580 = vstv %s579
    %v581 = vmul.f32 %v577, %v580
    %v582 = vmul.f32 %v578, %v580
    %v585 = vcombine.low %v581, %v582
    %v587 = vunpack.c.l.s4 1983009808
    %v588 = vunpack.c.0.s8 %v587
    %v589 = vlaneseq
    %v590 = vshrl.u32 %v589, 7
    %v591 = vsub.s32 %v588, %v590
    %v592 = vrot.slane %v585, %v591
    %v594 = vadd.f32 %v492, %v592
    %s595 = sld [smem:[#allocation2 + $0x26]]
    %v596 = vstv %s595
    %v597 = vmul.f32 %v577, %v596
    %v598 = vmul.f32 %v578, %v596
    %v601 = vcombine.low %v597, %v598
    %v603 = vunpack.c.l.s4 1983009808
    %v604 = vunpack.c.0.s8 %v603
    %v605 = vlaneseq
    %v606 = vshrl.u32 %v605, 7
    %v607 = vsub.s32 %v604, %v606
    %v608 = vrot.slane %v601, %v607
    %v610 = vadd.f32 %v508, %v608
    %s611 = sld [smem:[#allocation2 + $0x41]]
    %v612 = vstv %s611
    %v613 = vmul.f32 %v577, %v612
    %v614 = vmul.f32 %v578, %v612
    %v617 = vcombine.low %v613, %v614
    %v619 = vunpack.c.l.s4 1983009808
    %v620 = vunpack.c.0.s8 %v619
    %v621 = vlaneseq
    %v622 = vshrl.u32 %v621, 7
    %v623 = vsub.s32 %v620, %v622
    %v624 = vrot.slane %v617, %v623
    %v626 = vadd.f32 %v524, %v624
    %s627 = sld [smem:[#allocation2 + $0x5c]]
    %v628 = vstv %s627
    %v629 = vmul.f32 %v577, %v628
    %v630 = vmul.f32 %v578, %v628
    %v633 = vcombine.low %v629, %v630
    %v635 = vunpack.c.l.s4 1983009808
    %v636 = vunpack.c.0.s8 %v635
    %v637 = vlaneseq
    %v638 = vshrl.u32 %v637, 7
    %v639 = vsub.s32 %v636, %v638
    %v640 = vrot.slane %v633, %v639
    %v642 = vadd.f32 %v540, %v640
    %s643 = sld [smem:[#allocation2 + $0x77]]
    %v644 = vstv %s643
    %v645 = vmul.f32 %v577, %v644
    %v646 = vmul.f32 %v578, %v644
    %v649 = vcombine.low %v645, %v646
    %v651 = vunpack.c.l.s4 1983009808
    %v652 = vunpack.c.0.s8 %v651
    %v653 = vlaneseq
    %v654 = vshrl.u32 %v653, 7
    %v655 = vsub.s32 %v652, %v654
    %v656 = vrot.slane %v649, %v655
    %v658 = vadd.f32 %v556, %v656
    %s659 = sld [smem:[#allocation2 + $0x92]]
    %v660 = vstv %s659
    %v661 = vmul.f32 %v577, %v660
    %v662 = vmul.f32 %v578, %v660
    %v665 = vcombine.low %v661, %v662
    %v667 = vunpack.c.l.s4 1983009808
    %v668 = vunpack.c.0.s8 %v667
    %v669 = vlaneseq
    %v670 = vshrl.u32 %v669, 7
    %v671 = vsub.s32 %v668, %v670
    %v672 = vrot.slane %v665, %v671
    %v674 = vadd.f32 %v572, %v672
    %675 = vrot.lane.b32.xlu0 %v364, 126
    %v676 = vpop.permute.xlu0 %675
    %677 = vrot.lane.b32.xlu0 %v365, 126
    %v678 = vpop.permute.xlu0 %677
    %v679 = vsel %vm474, %v676, %v678
    %v680 = vsel %vm474, %v678, %v676
    %s681 = sld [smem:[#allocation2 + $0x14]]
    %v682 = vstv %s681
    %v683 = vmul.f32 %v679, %v682
    %v684 = vmul.f32 %v680, %v682
    %v687 = vcombine.low %v683, %v684
    %v689 = vunpack.c.l.s4 1983009808
    %v690 = vunpack.c.0.s8 %v689
    %v691 = vlaneseq
    %v692 = vshrl.u32 %v691, 7
    %v693 = vsub.s32 %v690, %v692
    %v694 = vrot.slane %v687, %v693
    %v696 = vadd.f32 %v594, %v694
    %s697 = sld [smem:[#allocation2 + $0x2f]]
    %v698 = vstv %s697
    %v699 = vmul.f32 %v679, %v698
    %v700 = vmul.f32 %v680, %v698
    %v703 = vcombine.low %v699, %v700
    %v705 = vunpack.c.l.s4 1983009808
    %v706 = vunpack.c.0.s8 %v705
    %v707 = vlaneseq
    %v708 = vshrl.u32 %v707, 7
    %v709 = vsub.s32 %v706, %v708
    %v710 = vrot.slane %v703, %v709
    %v712 = vadd.f32 %v610, %v710
    %s713 = sld [smem:[#allocation2 + $0x4a]]
    %v714 = vstv %s713
    %v715 = vmul.f32 %v679, %v714
    %v716 = vmul.f32 %v680, %v714
    %v719 = vcombine.low %v715, %v716
    %v721 = vunpack.c.l.s4 1983009808
    %v722 = vunpack.c.0.s8 %v721
    %v723 = vlaneseq
    %v724 = vshrl.u32 %v723, 7
    %v725 = vsub.s32 %v722, %v724
    %v726 = vrot.slane %v719, %v725
    %v728 = vadd.f32 %v626, %v726
    %s729 = sld [smem:[#allocation2 + $0x65]]
    %v730 = vstv %s729
    %v731 = vmul.f32 %v679, %v730
    %v732 = vmul.f32 %v680, %v730
    %v735 = vcombine.low %v731, %v732
    %v737 = vunpack.c.l.s4 1983009808
    %v738 = vunpack.c.0.s8 %v737
    %v739 = vlaneseq
    %v740 = vshrl.u32 %v739, 7
    %v741 = vsub.s32 %v738, %v740
    %v742 = vrot.slane %v735, %v741
    %v744 = vadd.f32 %v642, %v742
    %s745 = sld [smem:[#allocation2 + $0x80]]
    %v746 = vstv %s745
    %v747 = vmul.f32 %v679, %v746
    %v748 = vmul.f32 %v680, %v746
    %v751 = vcombine.low %v747, %v748
    %v753 = vunpack.c.l.s4 1983009808
    %v754 = vunpack.c.0.s8 %v753
    %v755 = vlaneseq
    %v756 = vshrl.u32 %v755, 7
    %v757 = vsub.s32 %v754, %v756
    %v758 = vrot.slane %v751, %v757
    %v760 = vadd.f32 %v658, %v758
    %s761 = sld [smem:[#allocation2 + $0x9b]]
    %v762 = vstv %s761
    %v763 = vmul.f32 %v679, %v762
    %v764 = vmul.f32 %v680, %v762
    %v767 = vcombine.low %v763, %v764
    %v769 = vunpack.c.l.s4 1983009808
    %v770 = vunpack.c.0.s8 %v769
    %v771 = vlaneseq
    %v772 = vshrl.u32 %v771, 7
    %v773 = vsub.s32 %v770, %v772
    %v774 = vrot.slane %v767, %v773
    %v776 = vadd.f32 %v674, %v774
    %777 = vrot.lane.b32.xlu0 %v135, 112
    %v778 = vpop.permute.xlu0 %777
    %779 = vrot.lane.b32.xlu0 %v136, 112
    %v780 = vpop.permute.xlu0 %779
    %vm781 = vcmp.lt.s32.totalorder %v144, 112
    %v782 = vsel %vm781, %v778, %v780
    %v783 = vsel %vm781, %v780, %v778
    %s784 = sld [smem:[#allocation2 + $0x3]]
    %v785 = vstv %s784
    %v786 = vmul.f32 %v782, %v785
    %v787 = vmul.f32 %v783, %v785
    %v790 = vcombine.low %v786, %v787
    %v792 = vunpack.c.l.s4 1983009808
    %v793 = vunpack.c.0.s8 %v792
    %v794 = vlaneseq
    %v795 = vshrl.u32 %v794, 7
    %v796 = vsub.s32 %v793, %v795
    %v797 = vrot.slane %v790, %v796
    %v799 = vadd.f32 %v696, %v797
    %s800 = sld [smem:[#allocation2 + $0x1e]]
    %v801 = vstv %s800
    %v802 = vmul.f32 %v782, %v801
    %v803 = vmul.f32 %v783, %v801
    %v806 = vcombine.low %v802, %v803
    %v808 = vunpack.c.l.s4 1983009808
    %v809 = vunpack.c.0.s8 %v808
    %v810 = vlaneseq
    %v811 = vshrl.u32 %v810, 7
    %v812 = vsub.s32 %v809, %v811
    %v813 = vrot.slane %v806, %v812
    %v815 = vadd.f32 %v712, %v813
    %s816 = sld [smem:[#allocation2 + $0x39]]
    %v817 = vstv %s816
    %v818 = vmul.f32 %v782, %v817
    %v819 = vmul.f32 %v783, %v817
    %v822 = vcombine.low %v818, %v819
    %v824 = vunpack.c.l.s4 1983009808
    %v825 = vunpack.c.0.s8 %v824
    %v826 = vlaneseq
    %v827 = vshrl.u32 %v826, 7
    %v828 = vsub.s32 %v825, %v827
    %v829 = vrot.slane %v822, %v828
    %v831 = vadd.f32 %v728, %v829
    %s832 = sld [smem:[#allocation2 + $0x54]]
    %v833 = vstv %s832
    %v834 = vmul.f32 %v782, %v833
    %v835 = vmul.f32 %v783, %v833
    %v838 = vcombine.low %v834, %v835
    %v840 = vunpack.c.l.s4 1983009808
    %v841 = vunpack.c.0.s8 %v840
    %v842 = vlaneseq
    %v843 = vshrl.u32 %v842, 7
    %v844 = vsub.s32 %v841, %v843
    %v845 = vrot.slane %v838, %v844
    %v847 = vadd.f32 %v744, %v845
    %s848 = sld [smem:[#allocation2 + $0x6f]]
    %v849 = vstv %s848
    %v850 = vmul.f32 %v782, %v849
    %v851 = vmul.f32 %v783, %v849
    %v854 = vcombine.low %v850, %v851
    %v856 = vunpack.c.l.s4 1983009808
    %v857 = vunpack.c.0.s8 %v856
    %v858 = vlaneseq
    %v859 = vshrl.u32 %v858, 7
    %v860 = vsub.s32 %v857, %v859
    %v861 = vrot.slane %v854, %v860
    %v863 = vadd.f32 %v760, %v861
    %s864 = sld [smem:[#allocation2 + $0x8a]]
    %v865 = vstv %s864
    %v866 = vmul.f32 %v782, %v865
    %v867 = vmul.f32 %v783, %v865
    %v870 = vcombine.low %v866, %v867
    %v872 = vunpack.c.l.s4 1983009808
    %v873 = vunpack.c.0.s8 %v872
    %v874 = vlaneseq
    %v875 = vshrl.u32 %v874, 7
    %v876 = vsub.s32 %v873, %v875
    %v877 = vrot.slane %v870, %v876
    %v879 = vadd.f32 %v776, %v877
    %880 = vrot.lane.b32.xlu0 %v251, 112
    %v881 = vpop.permute.xlu0 %880
    %882 = vrot.lane.b32.xlu0 %v252, 112
    %v883 = vpop.permute.xlu0 %882
    %v884 = vsel %vm781, %v881, %v883
    %v885 = vsel %vm781, %v883, %v881
    %s886 = sld [smem:[#allocation2 + $0xc]]
    %v887 = vstv %s886
    %v888 = vmul.f32 %v884, %v887
    %v889 = vmul.f32 %v885, %v887
    %v892 = vcombine.low %v888, %v889
    %v894 = vunpack.c.l.s4 1983009808
    %v895 = vunpack.c.0.s8 %v894
    %v896 = vlaneseq
    %v897 = vshrl.u32 %v896, 7
    %v898 = vsub.s32 %v895, %v897
    %v899 = vrot.slane %v892, %v898
    %v901 = vadd.f32 %v799, %v899
    %s902 = sld [smem:[#allocation2 + $0x27]]
    %v903 = vstv %s902
    %v904 = vmul.f32 %v884, %v903
    %v905 = vmul.f32 %v885, %v903
    %v908 = vcombine.low %v904, %v905
    %v910 = vunpack.c.l.s4 1983009808
    %v911 = vunpack.c.0.s8 %v910
    %v912 = vlaneseq
    %v913 = vshrl.u32 %v912, 7
    %v914 = vsub.s32 %v911, %v913
    %v915 = vrot.slane %v908, %v914
    %v917 = vadd.f32 %v815, %v915
    %s918 = sld [smem:[#allocation2 + $0x42]]
    %v919 = vstv %s918
    %v920 = vmul.f32 %v884, %v919
    %v921 = vmul.f32 %v885, %v919
    %v924 = vcombine.low %v920, %v921
    %v926 = vunpack.c.l.s4 1983009808
    %v927 = vunpack.c.0.s8 %v926
    %v928 = vlaneseq
    %v929 = vshrl.u32 %v928, 7
    %v930 = vsub.s32 %v927, %v929
    %v931 = vrot.slane %v924, %v930
    %v933 = vadd.f32 %v831, %v931
    %s934 = sld [smem:[#allocation2 + $0x5d]]
    %v935 = vstv %s934
    %v936 = vmul.f32 %v884, %v935
    %v937 = vmul.f32 %v885, %v935
    %v940 = vcombine.low %v936, %v937
    %v942 = vunpack.c.l.s4 1983009808
    %v943 = vunpack.c.0.s8 %v942
    %v944 = vlaneseq
    %v945 = vshrl.u32 %v944, 7
    %v946 = vsub.s32 %v943, %v945
    %v947 = vrot.slane %v940, %v946
    %v949 = vadd.f32 %v847, %v947
    %s950 = sld [smem:[#allocation2 + $0x78]]
    %v951 = vstv %s950
    %v952 = vmul.f32 %v884, %v951
    %v953 = vmul.f32 %v885, %v951
    %v956 = vcombine.low %v952, %v953
    %v958 = vunpack.c.l.s4 1983009808
    %v959 = vunpack.c.0.s8 %v958
    %v960 = vlaneseq
    %v961 = vshrl.u32 %v960, 7
    %v962 = vsub.s32 %v959, %v961
    %v963 = vrot.slane %v956, %v962
    %v965 = vadd.f32 %v863, %v963
    %s966 = sld [smem:[#allocation2 + $0x93]]
    %v967 = vstv %s966
    %v968 = vmul.f32 %v884, %v967
    %v969 = vmul.f32 %v885, %v967
    %v972 = vcombine.low %v968, %v969
    %v974 = vunpack.c.l.s4 1983009808
    %v975 = vunpack.c.0.s8 %v974
    %v976 = vlaneseq
    %v977 = vshrl.u32 %v976, 7
    %v978 = vsub.s32 %v975, %v977
    %v979 = vrot.slane %v972, %v978
    %v981 = vadd.f32 %v879, %v979
    %982 = vrot.lane.b32.xlu0 %v364, 112
    %v983 = vpop.permute.xlu0 %982
    %984 = vrot.lane.b32.xlu0 %v365, 112
    %v985 = vpop.permute.xlu0 %984
    %v986 = vsel %vm781, %v983, %v985
    %v987 = vsel %vm781, %v985, %v983
    %s988 = sld [smem:[#allocation2 + $0x15]]
    %v989 = vstv %s988
    %v990 = vmul.f32 %v986, %v989
    %v991 = vmul.f32 %v987, %v989
    %v994 = vcombine.low %v990, %v991
    %v996 = vunpack.c.l.s4 1983009808
    %v997 = vunpack.c.0.s8 %v996
    %v998 = vlaneseq
    %v999 = vshrl.u32 %v998, 7
    %v1000 = vsub.s32 %v997, %v999
    %v1001 = vrot.slane %v994, %v1000
    %v1003 = vadd.f32 %v901, %v1001
    %s1004 = sld [smem:[#allocation2 + $0x30]]
    %v1005 = vstv %s1004
    %v1006 = vmul.f32 %v986, %v1005
    %v1007 = vmul.f32 %v987, %v1005
    %v1010 = vcombine.low %v1006, %v1007
    %v1012 = vunpack.c.l.s4 1983009808
    %v1013 = vunpack.c.0.s8 %v1012
    %v1014 = vlaneseq
    %v1015 = vshrl.u32 %v1014, 7
    %v1016 = vsub.s32 %v1013, %v1015
    %v1017 = vrot.slane %v1010, %v1016
    %v1019 = vadd.f32 %v917, %v1017
    %s1020 = sld [smem:[#allocation2 + $0x4b]]
    %v1021 = vstv %s1020
    %v1022 = vmul.f32 %v986, %v1021
    %v1023 = vmul.f32 %v987, %v1021
    %v1026 = vcombine.low %v1022, %v1023
    %v1028 = vunpack.c.l.s4 1983009808
    %v1029 = vunpack.c.0.s8 %v1028
    %v1030 = vlaneseq
    %v1031 = vshrl.u32 %v1030, 7
    %v1032 = vsub.s32 %v1029, %v1031
    %v1033 = vrot.slane %v1026, %v1032
    %v1035 = vadd.f32 %v933, %v1033
    %s1036 = sld [smem:[#allocation2 + $0x66]]
    %v1037 = vstv %s1036
    %v1038 = vmul.f32 %v986, %v1037
    %v1039 = vmul.f32 %v987, %v1037
    %v1042 = vcombine.low %v1038, %v1039
    %v1044 = vunpack.c.l.s4 1983009808
    %v1045 = vunpack.c.0.s8 %v1044
    %v1046 = vlaneseq
    %v1047 = vshrl.u32 %v1046, 7
    %v1048 = vsub.s32 %v1045, %v1047
    %v1049 = vrot.slane %v1042, %v1048
    %v1051 = vadd.f32 %v949, %v1049
    %s1052 = sld [smem:[#allocation2 + $0x81]]
    %v1053 = vstv %s1052
    %v1054 = vmul.f32 %v986, %v1053
    %v1055 = vmul.f32 %v987, %v1053
    %v1058 = vcombine.low %v1054, %v1055
    %v1060 = vunpack.c.l.s4 1983009808
    %v1061 = vunpack.c.0.s8 %v1060
    %v1062 = vlaneseq
    %v1063 = vshrl.u32 %v1062, 7
    %v1064 = vsub.s32 %v1061, %v1063
    %v1065 = vrot.slane %v1058, %v1064
    %v1067 = vadd.f32 %v965, %v1065
    %s1068 = sld [smem:[#allocation2 + $0x9c]]
    %v1069 = vstv %s1068
    %v1070 = vmul.f32 %v986, %v1069
    %v1071 = vmul.f32 %v987, %v1069
    %v1074 = vcombine.low %v1070, %v1071
    %v1076 = vunpack.c.l.s4 1983009808
    %v1077 = vunpack.c.0.s8 %v1076
    %v1078 = vlaneseq
    %v1079 = vshrl.u32 %v1078, 7
    %v1080 = vsub.s32 %v1077, %v1079
    %v1081 = vrot.slane %v1074, %v1080
    %v1083 = vadd.f32 %v981, %v1081
    %1084 = vrot.lane.b32.xlu0 %v135, 111
    %v1085 = vpop.permute.xlu0 %1084
    %1086 = vrot.lane.b32.xlu0 %v136, 111
    %v1087 = vpop.permute.xlu0 %1086
    %vm1088 = vcmp.lt.s32.totalorder %v144, 111
    %v1089 = vsel %vm1088, %v1085, %v1087
    %v1090 = vsel %vm1088, %v1087, %v1085
    %s1091 = sld [smem:[#allocation2 + $0x4]]
    %v1092 = vstv %s1091
    %v1093 = vmul.f32 %v1089, %v1092
    %v1094 = vmul.f32 %v1090, %v1092
    %v1097 = vcombine.low %v1093, %v1094
    %v1099 = vunpack.c.l.s4 1983009808
    %v1100 = vunpack.c.0.s8 %v1099
    %v1101 = vlaneseq
    %v1102 = vshrl.u32 %v1101, 7
    %v1103 = vsub.s32 %v1100, %v1102
    %v1104 = vrot.slane %v1097, %v1103
    %v1106 = vadd.f32 %v1003, %v1104
    %s1107 = sld [smem:[#allocation2 + $0x1f]]
    %v1108 = vstv %s1107
    %v1109 = vmul.f32 %v1089, %v1108
    %v1110 = vmul.f32 %v1090, %v1108
    %v1113 = vcombine.low %v1109, %v1110
    %v1115 = vunpack.c.l.s4 1983009808
    %v1116 = vunpack.c.0.s8 %v1115
    %v1117 = vlaneseq
    %v1118 = vshrl.u32 %v1117, 7
    %v1119 = vsub.s32 %v1116, %v1118
    %v1120 = vrot.slane %v1113, %v1119
    %v1122 = vadd.f32 %v1019, %v1120
    %s1123 = sld [smem:[#allocation2 + $0x3a]]
    %v1124 = vstv %s1123
    %v1125 = vmul.f32 %v1089, %v1124
    %v1126 = vmul.f32 %v1090, %v1124
    %v1129 = vcombine.low %v1125, %v1126
    %v1131 = vunpack.c.l.s4 1983009808
    %v1132 = vunpack.c.0.s8 %v1131
    %v1133 = vlaneseq
    %v1134 = vshrl.u32 %v1133, 7
    %v1135 = vsub.s32 %v1132, %v1134
    %v1136 = vrot.slane %v1129, %v1135
    %v1138 = vadd.f32 %v1035, %v1136
    %s1139 = sld [smem:[#allocation2 + $0x55]]
    %v1140 = vstv %s1139
    %v1141 = vmul.f32 %v1089, %v1140
    %v1142 = vmul.f32 %v1090, %v1140
    %v1145 = vcombine.low %v1141, %v1142
    %v1147 = vunpack.c.l.s4 1983009808
    %v1148 = vunpack.c.0.s8 %v1147
    %v1149 = vlaneseq
    %v1150 = vshrl.u32 %v1149, 7
    %v1151 = vsub.s32 %v1148, %v1150
    %v1152 = vrot.slane %v1145, %v1151
    %v1154 = vadd.f32 %v1051, %v1152
    %s1155 = sld [smem:[#allocation2 + $0x70]]
    %v1156 = vstv %s1155
    %v1157 = vmul.f32 %v1089, %v1156
    %v1158 = vmul.f32 %v1090, %v1156
    %v1161 = vcombine.low %v1157, %v1158
    %v1163 = vunpack.c.l.s4 1983009808
    %v1164 = vunpack.c.0.s8 %v1163
    %v1165 = vlaneseq
    %v1166 = vshrl.u32 %v1165, 7
    %v1167 = vsub.s32 %v1164, %v1166
    %v1168 = vrot.slane %v1161, %v1167
    %v1170 = vadd.f32 %v1067, %v1168
    %s1171 = sld [smem:[#allocation2 + $0x8b]]
    %v1172 = vstv %s1171
    %v1173 = vmul.f32 %v1089, %v1172
    %v1174 = vmul.f32 %v1090, %v1172
    %v1177 = vcombine.low %v1173, %v1174
    %v1179 = vunpack.c.l.s4 1983009808
    %v1180 = vunpack.c.0.s8 %v1179
    %v1181 = vlaneseq
    %v1182 = vshrl.u32 %v1181, 7
    %v1183 = vsub.s32 %v1180, %v1182
    %v1184 = vrot.slane %v1177, %v1183
    %v1186 = vadd.f32 %v1083, %v1184
    %1187 = vrot.lane.b32.xlu0 %v251, 111
    %v1188 = vpop.permute.xlu0 %1187
    %1189 = vrot.lane.b32.xlu0 %v252, 111
    %v1190 = vpop.permute.xlu0 %1189
    %v1191 = vsel %vm1088, %v1188, %v1190
    %v1192 = vsel %vm1088, %v1190, %v1188
    %s1193 = sld [smem:[#allocation2 + $0xd]]
    %v1194 = vstv %s1193
    %v1195 = vmul.f32 %v1191, %v1194
    %v1196 = vmul.f32 %v1192, %v1194
    %v1199 = vcombine.low %v1195, %v1196
    %v1201 = vunpack.c.l.s4 1983009808
    %v1202 = vunpack.c.0.s8 %v1201
    %v1203 = vlaneseq
    %v1204 = vshrl.u32 %v1203, 7
    %v1205 = vsub.s32 %v1202, %v1204
    %v1206 = vrot.slane %v1199, %v1205
    %v1208 = vadd.f32 %v1106, %v1206
    %s1209 = sld [smem:[#allocation2 + $0x28]]
    %v1210 = vstv %s1209
    %v1211 = vmul.f32 %v1191, %v1210
    %v1212 = vmul.f32 %v1192, %v1210
    %v1215 = vcombine.low %v1211, %v1212
    %v1217 = vunpack.c.l.s4 1983009808
    %v1218 = vunpack.c.0.s8 %v1217
    %v1219 = vlaneseq
    %v1220 = vshrl.u32 %v1219, 7
    %v1221 = vsub.s32 %v1218, %v1220
    %v1222 = vrot.slane %v1215, %v1221
    %v1224 = vadd.f32 %v1122, %v1222
    %s1225 = sld [smem:[#allocation2 + $0x43]]
    %v1226 = vstv %s1225
    %v1227 = vmul.f32 %v1191, %v1226
    %v1228 = vmul.f32 %v1192, %v1226
    %v1231 = vcombine.low %v1227, %v1228
    %v1233 = vunpack.c.l.s4 1983009808
    %v1234 = vunpack.c.0.s8 %v1233
    %v1235 = vlaneseq
    %v1236 = vshrl.u32 %v1235, 7
    %v1237 = vsub.s32 %v1234, %v1236
    %v1238 = vrot.slane %v1231, %v1237
    %v1240 = vadd.f32 %v1138, %v1238
    %s1241 = sld [smem:[#allocation2 + $0x5e]]
    %v1242 = vstv %s1241
    %v1243 = vmul.f32 %v1191, %v1242
    %v1244 = vmul.f32 %v1192, %v1242
    %v1247 = vcombine.low %v1243, %v1244
    %v1249 = vunpack.c.l.s4 1983009808
    %v1250 = vunpack.c.0.s8 %v1249
    %v1251 = vlaneseq
    %v1252 = vshrl.u32 %v1251, 7
    %v1253 = vsub.s32 %v1250, %v1252
    %v1254 = vrot.slane %v1247, %v1253
    %v1256 = vadd.f32 %v1154, %v1254
    %s1257 = sld [smem:[#allocation2 + $0x79]]
    %v1258 = vstv %s1257
    %v1259 = vmul.f32 %v1191, %v1258
    %v1260 = vmul.f32 %v1192, %v1258
    %v1263 = vcombine.low %v1259, %v1260
    %v1265 = vunpack.c.l.s4 1983009808
    %v1266 = vunpack.c.0.s8 %v1265
    %v1267 = vlaneseq
    %v1268 = vshrl.u32 %v1267, 7
    %v1269 = vsub.s32 %v1266, %v1268
    %v1270 = vrot.slane %v1263, %v1269
    %v1272 = vadd.f32 %v1170, %v1270
    %s1273 = sld [smem:[#allocation2 + $0x94]]
    %v1274 = vstv %s1273
    %v1275 = vmul.f32 %v1191, %v1274
    %v1276 = vmul.f32 %v1192, %v1274
    %v1279 = vcombine.low %v1275, %v1276
    %v1281 = vunpack.c.l.s4 1983009808
    %v1282 = vunpack.c.0.s8 %v1281
    %v1283 = vlaneseq
    %v1284 = vshrl.u32 %v1283, 7
    %v1285 = vsub.s32 %v1282, %v1284
    %v1286 = vrot.slane %v1279, %v1285
    %v1288 = vadd.f32 %v1186, %v1286
    %1289 = vrot.lane.b32.xlu0 %v364, 111
    %v1290 = vpop.permute.xlu0 %1289
    %1291 = vrot.lane.b32.xlu0 %v365, 111
    %v1292 = vpop.permute.xlu0 %1291
    %v1293 = vsel %vm1088, %v1290, %v1292
    %v1294 = vsel %vm1088, %v1292, %v1290
    %s1295 = sld [smem:[#allocation2 + $0x16]]
    %v1296 = vstv %s1295
    %v1297 = vmul.f32 %v1293, %v1296
    %v1298 = vmul.f32 %v1294, %v1296
    %v1301 = vcombine.low %v1297, %v1298
    %v1303 = vunpack.c.l.s4 1983009808
    %v1304 = vunpack.c.0.s8 %v1303
    %v1305 = vlaneseq
    %v1306 = vshrl.u32 %v1305, 7
    %v1307 = vsub.s32 %v1304, %v1306
    %v1308 = vrot.slane %v1301, %v1307
    %v1310 = vadd.f32 %v1208, %v1308
    %s1311 = sld [smem:[#allocation2 + $0x31]]
    %v1312 = vstv %s1311
    %v1313 = vmul.f32 %v1293, %v1312
    %v1314 = vmul.f32 %v1294, %v1312
    %v1317 = vcombine.low %v1313, %v1314
    %v1319 = vunpack.c.l.s4 1983009808
    %v1320 = vunpack.c.0.s8 %v1319
    %v1321 = vlaneseq
    %v1322 = vshrl.u32 %v1321, 7
    %v1323 = vsub.s32 %v1320, %v1322
    %v1324 = vrot.slane %v1317, %v1323
    %v1326 = vadd.f32 %v1224, %v1324
    %s1327 = sld [smem:[#allocation2 + $0x4c]]
    %v1328 = vstv %s1327
    %v1329 = vmul.f32 %v1293, %v1328
    %v1330 = vmul.f32 %v1294, %v1328
    %v1333 = vcombine.low %v1329, %v1330
    %v1335 = vunpack.c.l.s4 1983009808
    %v1336 = vunpack.c.0.s8 %v1335
    %v1337 = vlaneseq
    %v1338 = vshrl.u32 %v1337, 7
    %v1339 = vsub.s32 %v1336, %v1338
    %v1340 = vrot.slane %v1333, %v1339
    %v1342 = vadd.f32 %v1240, %v1340
    %s1343 = sld [smem:[#allocation2 + $0x67]]
    %v1344 = vstv %s1343
    %v1345 = vmul.f32 %v1293, %v1344
    %v1346 = vmul.f32 %v1294, %v1344
    %v1349 = vcombine.low %v1345, %v1346
    %v1351 = vunpack.c.l.s4 1983009808
    %v1352 = vunpack.c.0.s8 %v1351
    %v1353 = vlaneseq
    %v1354 = vshrl.u32 %v1353, 7
    %v1355 = vsub.s32 %v1352, %v1354
    %v1356 = vrot.slane %v1349, %v1355
    %v1358 = vadd.f32 %v1256, %v1356
    %s1359 = sld [smem:[#allocation2 + $0x82]]
    %v1360 = vstv %s1359
    %v1361 = vmul.f32 %v1293, %v1360
    %v1362 = vmul.f32 %v1294, %v1360
    %v1365 = vcombine.low %v1361, %v1362
    %v1367 = vunpack.c.l.s4 1983009808
    %v1368 = vunpack.c.0.s8 %v1367
    %v1369 = vlaneseq
    %v1370 = vshrl.u32 %v1369, 7
    %v1371 = vsub.s32 %v1368, %v1370
    %v1372 = vrot.slane %v1365, %v1371
    %v1374 = vadd.f32 %v1272, %v1372
    %s1375 = sld [smem:[#allocation2 + $0x9d]]
    %v1376 = vstv %s1375
    %v1377 = vmul.f32 %v1293, %v1376
    %v1378 = vmul.f32 %v1294, %v1376
    %v1381 = vcombine.low %v1377, %v1378
    %v1383 = vunpack.c.l.s4 1983009808
    %v1384 = vunpack.c.0.s8 %v1383
    %v1385 = vlaneseq
    %v1386 = vshrl.u32 %v1385, 7
    %v1387 = vsub.s32 %v1384, %v1386
    %v1388 = vrot.slane %v1381, %v1387
    %v1390 = vadd.f32 %v1288, %v1388
    %1391 = vrot.lane.b32.xlu0 %v135, 110
    %v1392 = vpop.permute.xlu0 %1391
    %1393 = vrot.lane.b32.xlu0 %v136, 110
    %v1394 = vpop.permute.xlu0 %1393
    %vm1395 = vcmp.lt.s32.totalorder %v144, 110
    %v1396 = vsel %vm1395, %v1392, %v1394
    %v1397 = vsel %vm1395, %v1394, %v1392
    %s1398 = sld [smem:[#allocation2 + $0x5]]
    %v1399 = vstv %s1398
    %v1400 = vmul.f32 %v1396, %v1399
    %v1401 = vmul.f32 %v1397, %v1399
    %v1404 = vcombine.low %v1400, %v1401
    %v1406 = vunpack.c.l.s4 1983009808
    %v1407 = vunpack.c.0.s8 %v1406
    %v1408 = vlaneseq
    %v1409 = vshrl.u32 %v1408, 7
    %v1410 = vsub.s32 %v1407, %v1409
    %v1411 = vrot.slane %v1404, %v1410
    %v1413 = vadd.f32 %v1310, %v1411
    %s1414 = sld [smem:[#allocation2 + $0x20]]
    %v1415 = vstv %s1414
    %v1416 = vmul.f32 %v1396, %v1415
    %v1417 = vmul.f32 %v1397, %v1415
    %v1420 = vcombine.low %v1416, %v1417
    %v1422 = vunpack.c.l.s4 1983009808
    %v1423 = vunpack.c.0.s8 %v1422
    %v1424 = vlaneseq
    %v1425 = vshrl.u32 %v1424, 7
    %v1426 = vsub.s32 %v1423, %v1425
    %v1427 = vrot.slane %v1420, %v1426
    %v1429 = vadd.f32 %v1326, %v1427
    %s1430 = sld [smem:[#allocation2 + $0x3b]]
    %v1431 = vstv %s1430
    %v1432 = vmul.f32 %v1396, %v1431
    %v1433 = vmul.f32 %v1397, %v1431
    %v1436 = vcombine.low %v1432, %v1433
    %v1438 = vunpack.c.l.s4 1983009808
    %v1439 = vunpack.c.0.s8 %v1438
    %v1440 = vlaneseq
    %v1441 = vshrl.u32 %v1440, 7
    %v1442 = vsub.s32 %v1439, %v1441
    %v1443 = vrot.slane %v1436, %v1442
    %v1445 = vadd.f32 %v1342, %v1443
    %s1446 = sld [smem:[#allocation2 + $0x56]]
    %v1447 = vstv %s1446
    %v1448 = vmul.f32 %v1396, %v1447
    %v1449 = vmul.f32 %v1397, %v1447
    %v1452 = vcombine.low %v1448, %v1449
    %v1454 = vunpack.c.l.s4 1983009808
    %v1455 = vunpack.c.0.s8 %v1454
    %v1456 = vlaneseq
    %v1457 = vshrl.u32 %v1456, 7
    %v1458 = vsub.s32 %v1455, %v1457
    %v1459 = vrot.slane %v1452, %v1458
    %v1461 = vadd.f32 %v1358, %v1459
    %s1462 = sld [smem:[#allocation2 + $0x71]]
    %v1463 = vstv %s1462
    %v1464 = vmul.f32 %v1396, %v1463
    %v1465 = vmul.f32 %v1397, %v1463
    %v1468 = vcombine.low %v1464, %v1465
    %v1470 = vunpack.c.l.s4 1983009808
    %v1471 = vunpack.c.0.s8 %v1470
    %v1472 = vlaneseq
    %v1473 = vshrl.u32 %v1472, 7
    %v1474 = vsub.s32 %v1471, %v1473
    %v1475 = vrot.slane %v1468, %v1474
    %v1477 = vadd.f32 %v1374, %v1475
    %s1478 = sld [smem:[#allocation2 + $0x8c]]
    %v1479 = vstv %s1478
    %v1480 = vmul.f32 %v1396, %v1479
    %v1481 = vmul.f32 %v1397, %v1479
    %v1484 = vcombine.low %v1480, %v1481
    %v1486 = vunpack.c.l.s4 1983009808
    %v1487 = vunpack.c.0.s8 %v1486
    %v1488 = vlaneseq
    %v1489 = vshrl.u32 %v1488, 7
    %v1490 = vsub.s32 %v1487, %v1489
    %v1491 = vrot.slane %v1484, %v1490
    %v1493 = vadd.f32 %v1390, %v1491
    %1494 = vrot.lane.b32.xlu0 %v251, 110
    %v1495 = vpop.permute.xlu0 %1494
    %1496 = vrot.lane.b32.xlu0 %v252, 110
    %v1497 = vpop.permute.xlu0 %1496
    %v1498 = vsel %vm1395, %v1495, %v1497
    %v1499 = vsel %vm1395, %v1497, %v1495
    %s1500 = sld [smem:[#allocation2 + $0xe]]
    %v1501 = vstv %s1500
    %v1502 = vmul.f32 %v1498, %v1501
    %v1503 = vmul.f32 %v1499, %v1501
    %v1506 = vcombine.low %v1502, %v1503
    %v1508 = vunpack.c.l.s4 1983009808
    %v1509 = vunpack.c.0.s8 %v1508
    %v1510 = vlaneseq
    %v1511 = vshrl.u32 %v1510, 7
    %v1512 = vsub.s32 %v1509, %v1511
    %v1513 = vrot.slane %v1506, %v1512
    %v1515 = vadd.f32 %v1413, %v1513
    %s1516 = sld [smem:[#allocation2 + $0x29]]
    %v1517 = vstv %s1516
    %v1518 = vmul.f32 %v1498, %v1517
    %v1519 = vmul.f32 %v1499, %v1517
    %v1522 = vcombine.low %v1518, %v1519
    %v1524 = vunpack.c.l.s4 1983009808
    %v1525 = vunpack.c.0.s8 %v1524
    %v1526 = vlaneseq
    %v1527 = vshrl.u32 %v1526, 7
    %v1528 = vsub.s32 %v1525, %v1527
    %v1529 = vrot.slane %v1522, %v1528
    %v1531 = vadd.f32 %v1429, %v1529
    %s1532 = sld [smem:[#allocation2 + $0x44]]
    %v1533 = vstv %s1532
    %v1534 = vmul.f32 %v1498, %v1533
    %v1535 = vmul.f32 %v1499, %v1533
    %v1538 = vcombine.low %v1534, %v1535
    %v1540 = vunpack.c.l.s4 1983009808
    %v1541 = vunpack.c.0.s8 %v1540
    %v1542 = vlaneseq
    %v1543 = vshrl.u32 %v1542, 7
    %v1544 = vsub.s32 %v1541, %v1543
    %v1545 = vrot.slane %v1538, %v1544
    %v1547 = vadd.f32 %v1445, %v1545
    %s1548 = sld [smem:[#allocation2 + $0x5f]]
    %v1549 = vstv %s1548
    %v1550 = vmul.f32 %v1498, %v1549
    %v1551 = vmul.f32 %v1499, %v1549
    %v1554 = vcombine.low %v1550, %v1551
    %v1556 = vunpack.c.l.s4 1983009808
    %v1557 = vunpack.c.0.s8 %v1556
    %v1558 = vlaneseq
    %v1559 = vshrl.u32 %v1558, 7
    %v1560 = vsub.s32 %v1557, %v1559
    %v1561 = vrot.slane %v1554, %v1560
    %v1563 = vadd.f32 %v1461, %v1561
    %s1564 = sld [smem:[#allocation2 + $0x7a]]
    %v1565 = vstv %s1564
    %v1566 = vmul.f32 %v1498, %v1565
    %v1567 = vmul.f32 %v1499, %v1565
    %v1570 = vcombine.low %v1566, %v1567
    %v1572 = vunpack.c.l.s4 1983009808
    %v1573 = vunpack.c.0.s8 %v1572
    %v1574 = vlaneseq
    %v1575 = vshrl.u32 %v1574, 7
    %v1576 = vsub.s32 %v1573, %v1575
    %v1577 = vrot.slane %v1570, %v1576
    %v1579 = vadd.f32 %v1477, %v1577
    %s1580 = sld [smem:[#allocation2 + $0x95]]
    %v1581 = vstv %s1580
    %v1582 = vmul.f32 %v1498, %v1581
    %v1583 = vmul.f32 %v1499, %v1581
    %v1586 = vcombine.low %v1582, %v1583
    %v1588 = vunpack.c.l.s4 1983009808
    %v1589 = vunpack.c.0.s8 %v1588
    %v1590 = vlaneseq
    %v1591 = vshrl.u32 %v1590, 7
    %v1592 = vsub.s32 %v1589, %v1591
    %v1593 = vrot.slane %v1586, %v1592
    %v1595 = vadd.f32 %v1493, %v1593
    %1596 = vrot.lane.b32.xlu0 %v364, 110
    %v1597 = vpop.permute.xlu0 %1596
    %1598 = vrot.lane.b32.xlu0 %v365, 110
    %v1599 = vpop.permute.xlu0 %1598
    %v1600 = vsel %vm1395, %v1597, %v1599
    %v1601 = vsel %vm1395, %v1599, %v1597
    %s1602 = sld [smem:[#allocation2 + $0x17]]
    %v1603 = vstv %s1602
    %v1604 = vmul.f32 %v1600, %v1603
    %v1605 = vmul.f32 %v1601, %v1603
    %v1608 = vcombine.low %v1604, %v1605
    %v1610 = vunpack.c.l.s4 1983009808
    %v1611 = vunpack.c.0.s8 %v1610
    %v1612 = vlaneseq
    %v1613 = vshrl.u32 %v1612, 7
    %v1614 = vsub.s32 %v1611, %v1613
    %v1615 = vrot.slane %v1608, %v1614
    %v1617 = vadd.f32 %v1515, %v1615
    %s1618 = sld [smem:[#allocation2 + $0x32]]
    %v1619 = vstv %s1618
    %v1620 = vmul.f32 %v1600, %v1619
    %v1621 = vmul.f32 %v1601, %v1619
    %v1624 = vcombine.low %v1620, %v1621
    %v1626 = vunpack.c.l.s4 1983009808
    %v1627 = vunpack.c.0.s8 %v1626
    %v1628 = vlaneseq
    %v1629 = vshrl.u32 %v1628, 7
    %v1630 = vsub.s32 %v1627, %v1629
    %v1631 = vrot.slane %v1624, %v1630
    %v1633 = vadd.f32 %v1531, %v1631
    %s1634 = sld [smem:[#allocation2 + $0x4d]]
    %v1635 = vstv %s1634
    %v1636 = vmul.f32 %v1600, %v1635
    %v1637 = vmul.f32 %v1601, %v1635
    %v1640 = vcombine.low %v1636, %v1637
    %v1642 = vunpack.c.l.s4 1983009808
    %v1643 = vunpack.c.0.s8 %v1642
    %v1644 = vlaneseq
    %v1645 = vshrl.u32 %v1644, 7
    %v1646 = vsub.s32 %v1643, %v1645
    %v1647 = vrot.slane %v1640, %v1646
    %v1649 = vadd.f32 %v1547, %v1647
    %s1650 = sld [smem:[#allocation2 + $0x68]]
    %v1651 = vstv %s1650
    %v1652 = vmul.f32 %v1600, %v1651
    %v1653 = vmul.f32 %v1601, %v1651
    %v1656 = vcombine.low %v1652, %v1653
    %v1658 = vunpack.c.l.s4 1983009808
    %v1659 = vunpack.c.0.s8 %v1658
    %v1660 = vlaneseq
    %v1661 = vshrl.u32 %v1660, 7
    %v1662 = vsub.s32 %v1659, %v1661
    %v1663 = vrot.slane %v1656, %v1662
    %v1665 = vadd.f32 %v1563, %v1663
    %s1666 = sld [smem:[#allocation2 + $0x83]]
    %v1667 = vstv %s1666
    %v1668 = vmul.f32 %v1600, %v1667
    %v1669 = vmul.f32 %v1601, %v1667
    %v1672 = vcombine.low %v1668, %v1669
    %v1674 = vunpack.c.l.s4 1983009808
    %v1675 = vunpack.c.0.s8 %v1674
    %v1676 = vlaneseq
    %v1677 = vshrl.u32 %v1676, 7
    %v1678 = vsub.s32 %v1675, %v1677
    %v1679 = vrot.slane %v1672, %v1678
    %v1681 = vadd.f32 %v1579, %v1679
    %s1682 = sld [smem:[#allocation2 + $0x9e]]
    %v1683 = vstv %s1682
    %v1684 = vmul.f32 %v1600, %v1683
    %v1685 = vmul.f32 %v1601, %v1683
    %v1688 = vcombine.low %v1684, %v1685
    %v1690 = vunpack.c.l.s4 1983009808
    %v1691 = vunpack.c.0.s8 %v1690
    %v1692 = vlaneseq
    %v1693 = vshrl.u32 %v1692, 7
    %v1694 = vsub.s32 %v1691, %v1693
    %v1695 = vrot.slane %v1688, %v1694
    %v1697 = vadd.f32 %v1595, %v1695
    %1698 = vrot.lane.b32.xlu0 %v135, 96
    %v1699 = vpop.permute.xlu0 %1698
    %1700 = vrot.lane.b32.xlu0 %v136, 96
    %v1701 = vpop.permute.xlu0 %1700
    %vm1702 = vcmp.lt.s32.totalorder %v144, 96
    %v1703 = vsel %vm1702, %v1699, %v1701
    %v1704 = vsel %vm1702, %v1701, %v1699
    %s1705 = sld [smem:[#allocation2 + $0x6]]
    %v1706 = vstv %s1705
    %v1707 = vmul.f32 %v1703, %v1706
    %v1708 = vmul.f32 %v1704, %v1706
    %v1711 = vcombine.low %v1707, %v1708
    %v1713 = vunpack.c.l.s4 1983009808
    %v1714 = vunpack.c.0.s8 %v1713
    %v1715 = vlaneseq
    %v1716 = vshrl.u32 %v1715, 7
    %v1717 = vsub.s32 %v1714, %v1716
    %v1718 = vrot.slane %v1711, %v1717
    %v1720 = vadd.f32 %v1617, %v1718
    %s1721 = sld [smem:[#allocation2 + $0x21]]
    %v1722 = vstv %s1721
    %v1723 = vmul.f32 %v1703, %v1722
    %v1724 = vmul.f32 %v1704, %v1722
    %v1727 = vcombine.low %v1723, %v1724
    %v1729 = vunpack.c.l.s4 1983009808
    %v1730 = vunpack.c.0.s8 %v1729
    %v1731 = vlaneseq
    %v1732 = vshrl.u32 %v1731, 7
    %v1733 = vsub.s32 %v1730, %v1732
    %v1734 = vrot.slane %v1727, %v1733
    %v1736 = vadd.f32 %v1633, %v1734
    %s1737 = sld [smem:[#allocation2 + $0x3c]]
    %v1738 = vstv %s1737
    %v1739 = vmul.f32 %v1703, %v1738
    %v1740 = vmul.f32 %v1704, %v1738
    %v1743 = vcombine.low %v1739, %v1740
    %v1745 = vunpack.c.l.s4 1983009808
    %v1746 = vunpack.c.0.s8 %v1745
    %v1747 = vlaneseq
    %v1748 = vshrl.u32 %v1747, 7
    %v1749 = vsub.s32 %v1746, %v1748
    %v1750 = vrot.slane %v1743, %v1749
    %v1752 = vadd.f32 %v1649, %v1750
    %s1753 = sld [smem:[#allocation2 + $0x57]]
    %v1754 = vstv %s1753
    %v1755 = vmul.f32 %v1703, %v1754
    %v1756 = vmul.f32 %v1704, %v1754
    %v1759 = vcombine.low %v1755, %v1756
    %v1761 = vunpack.c.l.s4 1983009808
    %v1762 = vunpack.c.0.s8 %v1761
    %v1763 = vlaneseq
    %v1764 = vshrl.u32 %v1763, 7
    %v1765 = vsub.s32 %v1762, %v1764
    %v1766 = vrot.slane %v1759, %v1765
    %v1768 = vadd.f32 %v1665, %v1766
    %s1769 = sld [smem:[#allocation2 + $0x72]]
    %v1770 = vstv %s1769
    %v1771 = vmul.f32 %v1703, %v1770
    %v1772 = vmul.f32 %v1704, %v1770
    %v1775 = vcombine.low %v1771, %v1772
    %v1777 = vunpack.c.l.s4 1983009808
    %v1778 = vunpack.c.0.s8 %v1777
    %v1779 = vlaneseq
    %v1780 = vshrl.u32 %v1779, 7
    %v1781 = vsub.s32 %v1778, %v1780
    %v1782 = vrot.slane %v1775, %v1781
    %v1784 = vadd.f32 %v1681, %v1782
    %s1785 = sld [smem:[#allocation2 + $0x8d]]
    %v1786 = vstv %s1785
    %v1787 = vmul.f32 %v1703, %v1786
    %v1788 = vmul.f32 %v1704, %v1786
    %v1791 = vcombine.low %v1787, %v1788
    %v1793 = vunpack.c.l.s4 1983009808
    %v1794 = vunpack.c.0.s8 %v1793
    %v1795 = vlaneseq
    %v1796 = vshrl.u32 %v1795, 7
    %v1797 = vsub.s32 %v1794, %v1796
    %v1798 = vrot.slane %v1791, %v1797
    %v1800 = vadd.f32 %v1697, %v1798
    %1801 = vrot.lane.b32.xlu0 %v251, 96
    %v1802 = vpop.permute.xlu0 %1801
    %1803 = vrot.lane.b32.xlu0 %v252, 96
    %v1804 = vpop.permute.xlu0 %1803
    %v1805 = vsel %vm1702, %v1802, %v1804
    %v1806 = vsel %vm1702, %v1804, %v1802
    %s1807 = sld [smem:[#allocation2 + $0xf]]
    %v1808 = vstv %s1807
    %v1809 = vmul.f32 %v1805, %v1808
    %v1810 = vmul.f32 %v1806, %v1808
    %v1813 = vcombine.low %v1809, %v1810
    %v1815 = vunpack.c.l.s4 1983009808
    %v1816 = vunpack.c.0.s8 %v1815
    %v1817 = vlaneseq
    %v1818 = vshrl.u32 %v1817, 7
    %v1819 = vsub.s32 %v1816, %v1818
    %v1820 = vrot.slane %v1813, %v1819
    %v1822 = vadd.f32 %v1720, %v1820
    %s1823 = sld [smem:[#allocation2 + $0x2a]]
    %v1824 = vstv %s1823
    %v1825 = vmul.f32 %v1805, %v1824
    %v1826 = vmul.f32 %v1806, %v1824
    %v1829 = vcombine.low %v1825, %v1826
    %v1831 = vunpack.c.l.s4 1983009808
    %v1832 = vunpack.c.0.s8 %v1831
    %v1833 = vlaneseq
    %v1834 = vshrl.u32 %v1833, 7
    %v1835 = vsub.s32 %v1832, %v1834
    %v1836 = vrot.slane %v1829, %v1835
    %v1838 = vadd.f32 %v1736, %v1836
    %s1839 = sld [smem:[#allocation2 + $0x45]]
    %v1840 = vstv %s1839
    %v1841 = vmul.f32 %v1805, %v1840
    %v1842 = vmul.f32 %v1806, %v1840
    %v1845 = vcombine.low %v1841, %v1842
    %v1847 = vunpack.c.l.s4 1983009808
    %v1848 = vunpack.c.0.s8 %v1847
    %v1849 = vlaneseq
    %v1850 = vshrl.u32 %v1849, 7
    %v1851 = vsub.s32 %v1848, %v1850
    %v1852 = vrot.slane %v1845, %v1851
    %v1854 = vadd.f32 %v1752, %v1852
    %s1855 = sld [smem:[#allocation2 + $0x60]]
    %v1856 = vstv %s1855
    %v1857 = vmul.f32 %v1805, %v1856
    %v1858 = vmul.f32 %v1806, %v1856
    %v1861 = vcombine.low %v1857, %v1858
    %v1863 = vunpack.c.l.s4 1983009808
    %v1864 = vunpack.c.0.s8 %v1863
    %v1865 = vlaneseq
    %v1866 = vshrl.u32 %v1865, 7
    %v1867 = vsub.s32 %v1864, %v1866
    %v1868 = vrot.slane %v1861, %v1867
    %v1870 = vadd.f32 %v1768, %v1868
    %s1871 = sld [smem:[#allocation2 + $0x7b]]
    %v1872 = vstv %s1871
    %v1873 = vmul.f32 %v1805, %v1872
    %v1874 = vmul.f32 %v1806, %v1872
    %v1877 = vcombine.low %v1873, %v1874
    %v1879 = vunpack.c.l.s4 1983009808
    %v1880 = vunpack.c.0.s8 %v1879
    %v1881 = vlaneseq
    %v1882 = vshrl.u32 %v1881, 7
    %v1883 = vsub.s32 %v1880, %v1882
    %v1884 = vrot.slane %v1877, %v1883
    %v1886 = vadd.f32 %v1784, %v1884
    %s1887 = sld [smem:[#allocation2 + $0x96]]
    %v1888 = vstv %s1887
    %v1889 = vmul.f32 %v1805, %v1888
    %v1890 = vmul.f32 %v1806, %v1888
    %v1893 = vcombine.low %v1889, %v1890
    %v1895 = vunpack.c.l.s4 1983009808
    %v1896 = vunpack.c.0.s8 %v1895
    %v1897 = vlaneseq
    %v1898 = vshrl.u32 %v1897, 7
    %v1899 = vsub.s32 %v1896, %v1898
    %v1900 = vrot.slane %v1893, %v1899
    %v1902 = vadd.f32 %v1800, %v1900
    %1903 = vrot.lane.b32.xlu0 %v364, 96
    %v1904 = vpop.permute.xlu0 %1903
    %1905 = vrot.lane.b32.xlu0 %v365, 96
    %v1906 = vpop.permute.xlu0 %1905
    %v1907 = vsel %vm1702, %v1904, %v1906
    %v1908 = vsel %vm1702, %v1906, %v1904
    %s1909 = sld [smem:[#allocation2 + $0x18]]
    %v1910 = vstv %s1909
    %v1911 = vmul.f32 %v1907, %v1910
    %v1912 = vmul.f32 %v1908, %v1910
    %v1915 = vcombine.low %v1911, %v1912
    %v1917 = vunpack.c.l.s4 1983009808
    %v1918 = vunpack.c.0.s8 %v1917
    %v1919 = vlaneseq
    %v1920 = vshrl.u32 %v1919, 7
    %v1921 = vsub.s32 %v1918, %v1920
    %v1922 = vrot.slane %v1915, %v1921
    %v1924 = vadd.f32 %v1822, %v1922
    %s1925 = sld [smem:[#allocation2 + $0x33]]
    %v1926 = vstv %s1925
    %v1927 = vmul.f32 %v1907, %v1926
    %v1928 = vmul.f32 %v1908, %v1926
    %v1931 = vcombine.low %v1927, %v1928
    %v1933 = vunpack.c.l.s4 1983009808
    %v1934 = vunpack.c.0.s8 %v1933
    %v1935 = vlaneseq
    %v1936 = vshrl.u32 %v1935, 7
    %v1937 = vsub.s32 %v1934, %v1936
    %v1938 = vrot.slane %v1931, %v1937
    %v1940 = vadd.f32 %v1838, %v1938
    %s1941 = sld [smem:[#allocation2 + $0x4e]]
    %v1942 = vstv %s1941
    %v1943 = vmul.f32 %v1907, %v1942
    %v1944 = vmul.f32 %v1908, %v1942
    %v1947 = vcombine.low %v1943, %v1944
    %v1949 = vunpack.c.l.s4 1983009808
    %v1950 = vunpack.c.0.s8 %v1949
    %v1951 = vlaneseq
    %v1952 = vshrl.u32 %v1951, 7
    %v1953 = vsub.s32 %v1950, %v1952
    %v1954 = vrot.slane %v1947, %v1953
    %v1956 = vadd.f32 %v1854, %v1954
    %s1957 = sld [smem:[#allocation2 + $0x69]]
    %v1958 = vstv %s1957
    %v1959 = vmul.f32 %v1907, %v1958
    %v1960 = vmul.f32 %v1908, %v1958
    %v1963 = vcombine.low %v1959, %v1960
    %v1965 = vunpack.c.l.s4 1983009808
    %v1966 = vunpack.c.0.s8 %v1965
    %v1967 = vlaneseq
    %v1968 = vshrl.u32 %v1967, 7
    %v1969 = vsub.s32 %v1966, %v1968
    %v1970 = vrot.slane %v1963, %v1969
    %v1972 = vadd.f32 %v1870, %v1970
    %s1973 = sld [smem:[#allocation2 + $0x84]]
    %v1974 = vstv %s1973
    %v1975 = vmul.f32 %v1907, %v1974
    %v1976 = vmul.f32 %v1908, %v1974
    %v1979 = vcombine.low %v1975, %v1976
    %v1981 = vunpack.c.l.s4 1983009808
    %v1982 = vunpack.c.0.s8 %v1981
    %v1983 = vlaneseq
    %v1984 = vshrl.u32 %v1983, 7
    %v1985 = vsub.s32 %v1982, %v1984
    %v1986 = vrot.slane %v1979, %v1985
    %v1988 = vadd.f32 %v1886, %v1986
    %s1989 = sld [smem:[#allocation2 + $0x9f]]
    %v1990 = vstv %s1989
    %v1991 = vmul.f32 %v1907, %v1990
    %v1992 = vmul.f32 %v1908, %v1990
    %v1995 = vcombine.low %v1991, %v1992
    %v1997 = vunpack.c.l.s4 1983009808
    %v1998 = vunpack.c.0.s8 %v1997
    %v1999 = vlaneseq
    %v2000 = vshrl.u32 %v1999, 7
    %v2001 = vsub.s32 %v1998, %v2000
    %v2002 = vrot.slane %v1995, %v2001
    %v2004 = vadd.f32 %v1902, %v2002
    %2005 = vrot.lane.b32.xlu0 %v135, 95
    %v2006 = vpop.permute.xlu0 %2005
    %2007 = vrot.lane.b32.xlu0 %v136, 95
    %v2008 = vpop.permute.xlu0 %2007
    %vm2009 = vcmp.lt.s32.totalorder %v144, 95
    %v2010 = vsel %vm2009, %v2006, %v2008
    %v2011 = vsel %vm2009, %v2008, %v2006
    %s2012 = sld [smem:[#allocation2 + $0x7]]
    %v2013 = vstv %s2012
    %v2014 = vmul.f32 %v2010, %v2013
    %v2015 = vmul.f32 %v2011, %v2013
    %v2018 = vcombine.low %v2014, %v2015
    %v2020 = vunpack.c.l.s4 1983009808
    %v2021 = vunpack.c.0.s8 %v2020
    %v2022 = vlaneseq
    %v2023 = vshrl.u32 %v2022, 7
    %v2024 = vsub.s32 %v2021, %v2023
    %v2025 = vrot.slane %v2018, %v2024
    %v2027 = vadd.f32 %v1924, %v2025
    %s2028 = sld [smem:[#allocation2 + $0x22]]
    %v2029 = vstv %s2028
    %v2030 = vmul.f32 %v2010, %v2029
    %v2031 = vmul.f32 %v2011, %v2029
    %v2034 = vcombine.low %v2030, %v2031
    %v2036 = vunpack.c.l.s4 1983009808
    %v2037 = vunpack.c.0.s8 %v2036
    %v2038 = vlaneseq
    %v2039 = vshrl.u32 %v2038, 7
    %v2040 = vsub.s32 %v2037, %v2039
    %v2041 = vrot.slane %v2034, %v2040
    %v2043 = vadd.f32 %v1940, %v2041
    %s2044 = sld [smem:[#allocation2 + $0x3d]]
    %v2045 = vstv %s2044
    %v2046 = vmul.f32 %v2010, %v2045
    %v2047 = vmul.f32 %v2011, %v2045
    %v2050 = vcombine.low %v2046, %v2047
    %v2052 = vunpack.c.l.s4 1983009808
    %v2053 = vunpack.c.0.s8 %v2052
    %v2054 = vlaneseq
    %v2055 = vshrl.u32 %v2054, 7
    %v2056 = vsub.s32 %v2053, %v2055
    %v2057 = vrot.slane %v2050, %v2056
    %v2059 = vadd.f32 %v1956, %v2057
    %s2060 = sld [smem:[#allocation2 + $0x58]]
    %v2061 = vstv %s2060
    %v2062 = vmul.f32 %v2010, %v2061
    %v2063 = vmul.f32 %v2011, %v2061
    %v2066 = vcombine.low %v2062, %v2063
    %v2068 = vunpack.c.l.s4 1983009808
    %v2069 = vunpack.c.0.s8 %v2068
    %v2070 = vlaneseq
    %v2071 = vshrl.u32 %v2070, 7
    %v2072 = vsub.s32 %v2069, %v2071
    %v2073 = vrot.slane %v2066, %v2072
    %v2075 = vadd.f32 %v1972, %v2073
    %s2076 = sld [smem:[#allocation2 + $0x73]]
    %v2077 = vstv %s2076
    %v2078 = vmul.f32 %v2010, %v2077
    %v2079 = vmul.f32 %v2011, %v2077
    %v2082 = vcombine.low %v2078, %v2079
    %v2084 = vunpack.c.l.s4 1983009808
    %v2085 = vunpack.c.0.s8 %v2084
    %v2086 = vlaneseq
    %v2087 = vshrl.u32 %v2086, 7
    %v2088 = vsub.s32 %v2085, %v2087
    %v2089 = vrot.slane %v2082, %v2088
    %v2091 = vadd.f32 %v1988, %v2089
    %s2092 = sld [smem:[#allocation2 + $0x8e]]
    %v2093 = vstv %s2092
    %v2094 = vmul.f32 %v2010, %v2093
    %v2095 = vmul.f32 %v2011, %v2093
    %v2098 = vcombine.low %v2094, %v2095
    %v2100 = vunpack.c.l.s4 1983009808
    %v2101 = vunpack.c.0.s8 %v2100
    %v2102 = vlaneseq
    %v2103 = vshrl.u32 %v2102, 7
    %v2104 = vsub.s32 %v2101, %v2103
    %v2105 = vrot.slane %v2098, %v2104
    %v2107 = vadd.f32 %v2004, %v2105
    %2108 = vrot.lane.b32.xlu0 %v251, 95
    %v2109 = vpop.permute.xlu0 %2108
    %2110 = vrot.lane.b32.xlu0 %v252, 95
    %v2111 = vpop.permute.xlu0 %2110
    %v2112 = vsel %vm2009, %v2109, %v2111
    %v2113 = vsel %vm2009, %v2111, %v2109
    %s2114 = sld [smem:[#allocation2 + $0x10]]
    %v2115 = vstv %s2114
    %v2116 = vmul.f32 %v2112, %v2115
    %v2117 = vmul.f32 %v2113, %v2115
    %v2120 = vcombine.low %v2116, %v2117
    %v2122 = vunpack.c.l.s4 1983009808
    %v2123 = vunpack.c.0.s8 %v2122
    %v2124 = vlaneseq
    %v2125 = vshrl.u32 %v2124, 7
    %v2126 = vsub.s32 %v2123, %v2125
    %v2127 = vrot.slane %v2120, %v2126
    %v2129 = vadd.f32 %v2027, %v2127
    %s2130 = sld [smem:[#allocation2 + $0x2b]]
    %v2131 = vstv %s2130
    %v2132 = vmul.f32 %v2112, %v2131
    %v2133 = vmul.f32 %v2113, %v2131
    %v2136 = vcombine.low %v2132, %v2133
    %v2138 = vunpack.c.l.s4 1983009808
    %v2139 = vunpack.c.0.s8 %v2138
    %v2140 = vlaneseq
    %v2141 = vshrl.u32 %v2140, 7
    %v2142 = vsub.s32 %v2139, %v2141
    %v2143 = vrot.slane %v2136, %v2142
    %v2145 = vadd.f32 %v2043, %v2143
    %s2146 = sld [smem:[#allocation2 + $0x46]]
    %v2147 = vstv %s2146
    %v2148 = vmul.f32 %v2112, %v2147
    %v2149 = vmul.f32 %v2113, %v2147
    %v2152 = vcombine.low %v2148, %v2149
    %v2154 = vunpack.c.l.s4 1983009808
    %v2155 = vunpack.c.0.s8 %v2154
    %v2156 = vlaneseq
    %v2157 = vshrl.u32 %v2156, 7
    %v2158 = vsub.s32 %v2155, %v2157
    %v2159 = vrot.slane %v2152, %v2158
    %v2161 = vadd.f32 %v2059, %v2159
    %s2162 = sld [smem:[#allocation2 + $0x61]]
    %v2163 = vstv %s2162
    %v2164 = vmul.f32 %v2112, %v2163
    %v2165 = vmul.f32 %v2113, %v2163
    %v2168 = vcombine.low %v2164, %v2165
    %v2170 = vunpack.c.l.s4 1983009808
    %v2171 = vunpack.c.0.s8 %v2170
    %v2172 = vlaneseq
    %v2173 = vshrl.u32 %v2172, 7
    %v2174 = vsub.s32 %v2171, %v2173
    %v2175 = vrot.slane %v2168, %v2174
    %v2177 = vadd.f32 %v2075, %v2175
    %s2178 = sld [smem:[#allocation2 + $0x7c]]
    %v2179 = vstv %s2178
    %v2180 = vmul.f32 %v2112, %v2179
    %v2181 = vmul.f32 %v2113, %v2179
    %v2184 = vcombine.low %v2180, %v2181
    %v2186 = vunpack.c.l.s4 1983009808
    %v2187 = vunpack.c.0.s8 %v2186
    %v2188 = vlaneseq
    %v2189 = vshrl.u32 %v2188, 7
    %v2190 = vsub.s32 %v2187, %v2189
    %v2191 = vrot.slane %v2184, %v2190
    %v2193 = vadd.f32 %v2091, %v2191
    %s2194 = sld [smem:[#allocation2 + $0x97]]
    %v2195 = vstv %s2194
    %v2196 = vmul.f32 %v2112, %v2195
    %v2197 = vmul.f32 %v2113, %v2195
    %v2200 = vcombine.low %v2196, %v2197
    %v2202 = vunpack.c.l.s4 1983009808
    %v2203 = vunpack.c.0.s8 %v2202
    %v2204 = vlaneseq
    %v2205 = vshrl.u32 %v2204, 7
    %v2206 = vsub.s32 %v2203, %v2205
    %v2207 = vrot.slane %v2200, %v2206
    %v2209 = vadd.f32 %v2107, %v2207
    %2210 = vrot.lane.b32.xlu0 %v364, 95
    %v2211 = vpop.permute.xlu0 %2210
    %2212 = vrot.lane.b32.xlu0 %v365, 95
    %v2213 = vpop.permute.xlu0 %2212
    %v2214 = vsel %vm2009, %v2211, %v2213
    %v2215 = vsel %vm2009, %v2213, %v2211
    %s2216 = sld [smem:[#allocation2 + $0x19]]
    %v2217 = vstv %s2216
    %v2218 = vmul.f32 %v2214, %v2217
    %v2219 = vmul.f32 %v2215, %v2217
    %v2222 = vcombine.low %v2218, %v2219
    %v2224 = vunpack.c.l.s4 1983009808
    %v2225 = vunpack.c.0.s8 %v2224
    %v2226 = vlaneseq
    %v2227 = vshrl.u32 %v2226, 7
    %v2228 = vsub.s32 %v2225, %v2227
    %v2229 = vrot.slane %v2222, %v2228
    %v2231 = vadd.f32 %v2129, %v2229
    %s2232 = sld [smem:[#allocation2 + $0x34]]
    %v2233 = vstv %s2232
    %v2234 = vmul.f32 %v2214, %v2233
    %v2235 = vmul.f32 %v2215, %v2233
    %v2238 = vcombine.low %v2234, %v2235
    %v2240 = vunpack.c.l.s4 1983009808
    %v2241 = vunpack.c.0.s8 %v2240
    %v2242 = vlaneseq
    %v2243 = vshrl.u32 %v2242, 7
    %v2244 = vsub.s32 %v2241, %v2243
    %v2245 = vrot.slane %v2238, %v2244
    %v2247 = vadd.f32 %v2145, %v2245
    %s2248 = sld [smem:[#allocation2 + $0x4f]]
    %v2249 = vstv %s2248
    %v2250 = vmul.f32 %v2214, %v2249
    %v2251 = vmul.f32 %v2215, %v2249
    %v2254 = vcombine.low %v2250, %v2251
    %v2256 = vunpack.c.l.s4 1983009808
    %v2257 = vunpack.c.0.s8 %v2256
    %v2258 = vlaneseq
    %v2259 = vshrl.u32 %v2258, 7
    %v2260 = vsub.s32 %v2257, %v2259
    %v2261 = vrot.slane %v2254, %v2260
    %v2263 = vadd.f32 %v2161, %v2261
    %s2264 = sld [smem:[#allocation2 + $0x6a]]
    %v2265 = vstv %s2264
    %v2266 = vmul.f32 %v2214, %v2265
    %v2267 = vmul.f32 %v2215, %v2265
    %v2270 = vcombine.low %v2266, %v2267
    %v2272 = vunpack.c.l.s4 1983009808
    %v2273 = vunpack.c.0.s8 %v2272
    %v2274 = vlaneseq
    %v2275 = vshrl.u32 %v2274, 7
    %v2276 = vsub.s32 %v2273, %v2275
    %v2277 = vrot.slane %v2270, %v2276
    %v2279 = vadd.f32 %v2177, %v2277
    %s2280 = sld [smem:[#allocation2 + $0x85]]
    %v2281 = vstv %s2280
    %v2282 = vmul.f32 %v2214, %v2281
    %v2283 = vmul.f32 %v2215, %v2281
    %v2286 = vcombine.low %v2282, %v2283
    %v2288 = vunpack.c.l.s4 1983009808
    %v2289 = vunpack.c.0.s8 %v2288
    %v2290 = vlaneseq
    %v2291 = vshrl.u32 %v2290, 7
    %v2292 = vsub.s32 %v2289, %v2291
    %v2293 = vrot.slane %v2286, %v2292
    %v2295 = vadd.f32 %v2193, %v2293
    %s2296 = sld [smem:[#allocation2 + $0xa0]]
    %v2297 = vstv %s2296
    %v2298 = vmul.f32 %v2214, %v2297
    %v2299 = vmul.f32 %v2215, %v2297
    %v2302 = vcombine.low %v2298, %v2299
    %v2304 = vunpack.c.l.s4 1983009808
    %v2305 = vunpack.c.0.s8 %v2304
    %v2306 = vlaneseq
    %v2307 = vshrl.u32 %v2306, 7
    %v2308 = vsub.s32 %v2305, %v2307
    %v2309 = vrot.slane %v2302, %v2308
    %v2311 = vadd.f32 %v2209, %v2309
    %2312 = vrot.lane.b32.xlu0 %v135, 94
    %v2313 = vpop.permute.xlu0 %2312
    %2314 = vrot.lane.b32.xlu0 %v136, 94
    %v2315 = vpop.permute.xlu0 %2314
    %vm2316 = vcmp.lt.s32.totalorder %v144, 94
    %v2317 = vsel %vm2316, %v2313, %v2315
    %v2318 = vsel %vm2316, %v2315, %v2313
    %s2319 = sld [smem:[#allocation2 + $0x8]]
    %v2320 = vstv %s2319
    %v2321 = vmul.f32 %v2317, %v2320
    %v2322 = vmul.f32 %v2318, %v2320
    %v2325 = vcombine.low %v2321, %v2322
    %v2327 = vunpack.c.l.s4 1983009808
    %v2328 = vunpack.c.0.s8 %v2327
    %v2329 = vlaneseq
    %v2330 = vshrl.u32 %v2329, 7
    %v2331 = vsub.s32 %v2328, %v2330
    %v2332 = vrot.slane %v2325, %v2331
    %v2334 = vadd.f32 %v2231, %v2332
    %s2335 = sld [smem:[#allocation2 + $0x23]]
    %v2336 = vstv %s2335
    %v2337 = vmul.f32 %v2317, %v2336
    %v2338 = vmul.f32 %v2318, %v2336
    %v2341 = vcombine.low %v2337, %v2338
    %v2343 = vunpack.c.l.s4 1983009808
    %v2344 = vunpack.c.0.s8 %v2343
    %v2345 = vlaneseq
    %v2346 = vshrl.u32 %v2345, 7
    %v2347 = vsub.s32 %v2344, %v2346
    %v2348 = vrot.slane %v2341, %v2347
    %v2350 = vadd.f32 %v2247, %v2348
    %s2351 = sld [smem:[#allocation2 + $0x3e]]
    %v2352 = vstv %s2351
    %v2353 = vmul.f32 %v2317, %v2352
    %v2354 = vmul.f32 %v2318, %v2352
    %v2357 = vcombine.low %v2353, %v2354
    %v2359 = vunpack.c.l.s4 1983009808
    %v2360 = vunpack.c.0.s8 %v2359
    %v2361 = vlaneseq
    %v2362 = vshrl.u32 %v2361, 7
    %v2363 = vsub.s32 %v2360, %v2362
    %v2364 = vrot.slane %v2357, %v2363
    %v2366 = vadd.f32 %v2263, %v2364
    %s2367 = sld [smem:[#allocation2 + $0x59]]
    %v2368 = vstv %s2367
    %v2369 = vmul.f32 %v2317, %v2368
    %v2370 = vmul.f32 %v2318, %v2368
    %v2373 = vcombine.low %v2369, %v2370
    %v2375 = vunpack.c.l.s4 1983009808
    %v2376 = vunpack.c.0.s8 %v2375
    %v2377 = vlaneseq
    %v2378 = vshrl.u32 %v2377, 7
    %v2379 = vsub.s32 %v2376, %v2378
    %v2380 = vrot.slane %v2373, %v2379
    %v2382 = vadd.f32 %v2279, %v2380
    %s2383 = sld [smem:[#allocation2 + $0x74]]
    %v2384 = vstv %s2383
    %v2385 = vmul.f32 %v2317, %v2384
    %v2386 = vmul.f32 %v2318, %v2384
    %v2389 = vcombine.low %v2385, %v2386
    %v2391 = vunpack.c.l.s4 1983009808
    %v2392 = vunpack.c.0.s8 %v2391
    %v2393 = vlaneseq
    %v2394 = vshrl.u32 %v2393, 7
    %v2395 = vsub.s32 %v2392, %v2394
    %v2396 = vrot.slane %v2389, %v2395
    %v2398 = vadd.f32 %v2295, %v2396
    %s2399 = sld [smem:[#allocation2 + $0x8f]]
    %v2400 = vstv %s2399
    %v2401 = vmul.f32 %v2317, %v2400
    %v2402 = vmul.f32 %v2318, %v2400
    %v2405 = vcombine.low %v2401, %v2402
    %v2407 = vunpack.c.l.s4 1983009808
    %v2408 = vunpack.c.0.s8 %v2407
    %v2409 = vlaneseq
    %v2410 = vshrl.u32 %v2409, 7
    %v2411 = vsub.s32 %v2408, %v2410
    %v2412 = vrot.slane %v2405, %v2411
    %v2414 = vadd.f32 %v2311, %v2412
    %2415 = vrot.lane.b32.xlu0 %v251, 94
    %v2416 = vpop.permute.xlu0 %2415
    %2417 = vrot.lane.b32.xlu0 %v252, 94
    %v2418 = vpop.permute.xlu0 %2417
    %v2419 = vsel %vm2316, %v2416, %v2418
    %v2420 = vsel %vm2316, %v2418, %v2416
    %s2421 = sld [smem:[#allocation2 + $0x11]]
    %v2422 = vstv %s2421
    %v2423 = vmul.f32 %v2419, %v2422
    %v2424 = vmul.f32 %v2420, %v2422
    %v2427 = vcombine.low %v2423, %v2424
    %v2429 = vunpack.c.l.s4 1983009808
    %v2430 = vunpack.c.0.s8 %v2429
    %v2431 = vlaneseq
    %v2432 = vshrl.u32 %v2431, 7
    %v2433 = vsub.s32 %v2430, %v2432
    %v2434 = vrot.slane %v2427, %v2433
    %v2436 = vadd.f32 %v2334, %v2434
    %s2437 = sld [smem:[#allocation2 + $0x2c]]
    %v2438 = vstv %s2437
    %v2439 = vmul.f32 %v2419, %v2438
    %v2440 = vmul.f32 %v2420, %v2438
    %v2443 = vcombine.low %v2439, %v2440
    %v2445 = vunpack.c.l.s4 1983009808
    %v2446 = vunpack.c.0.s8 %v2445
    %v2447 = vlaneseq
    %v2448 = vshrl.u32 %v2447, 7
    %v2449 = vsub.s32 %v2446, %v2448
    %v2450 = vrot.slane %v2443, %v2449
    %v2452 = vadd.f32 %v2350, %v2450
    %s2453 = sld [smem:[#allocation2 + $0x47]]
    %v2454 = vstv %s2453
    %v2455 = vmul.f32 %v2419, %v2454
    %v2456 = vmul.f32 %v2420, %v2454
    %v2459 = vcombine.low %v2455, %v2456
    %v2461 = vunpack.c.l.s4 1983009808
    %v2462 = vunpack.c.0.s8 %v2461
    %v2463 = vlaneseq
    %v2464 = vshrl.u32 %v2463, 7
    %v2465 = vsub.s32 %v2462, %v2464
    %v2466 = vrot.slane %v2459, %v2465
    %v2468 = vadd.f32 %v2366, %v2466
    %s2469 = sld [smem:[#allocation2 + $0x62]]
    %v2470 = vstv %s2469
    %v2471 = vmul.f32 %v2419, %v2470
    %v2472 = vmul.f32 %v2420, %v2470
    %v2475 = vcombine.low %v2471, %v2472
    %v2477 = vunpack.c.l.s4 1983009808
    %v2478 = vunpack.c.0.s8 %v2477
    %v2479 = vlaneseq
    %v2480 = vshrl.u32 %v2479, 7
    %v2481 = vsub.s32 %v2478, %v2480
    %v2482 = vrot.slane %v2475, %v2481
    %v2484 = vadd.f32 %v2382, %v2482
    %s2485 = sld [smem:[#allocation2 + $0x7d]]
    %v2486 = vstv %s2485
    %v2487 = vmul.f32 %v2419, %v2486
    %v2488 = vmul.f32 %v2420, %v2486
    %v2491 = vcombine.low %v2487, %v2488
    %v2493 = vunpack.c.l.s4 1983009808
    %v2494 = vunpack.c.0.s8 %v2493
    %v2495 = vlaneseq
    %v2496 = vshrl.u32 %v2495, 7
    %v2497 = vsub.s32 %v2494, %v2496
    %v2498 = vrot.slane %v2491, %v2497
    %v2500 = vadd.f32 %v2398, %v2498
    %s2501 = sld [smem:[#allocation2 + $0x98]]
    %v2502 = vstv %s2501
    %v2503 = vmul.f32 %v2419, %v2502
    %v2504 = vmul.f32 %v2420, %v2502
    %v2507 = vcombine.low %v2503, %v2504
    %v2509 = vunpack.c.l.s4 1983009808
    %v2510 = vunpack.c.0.s8 %v2509
    %v2511 = vlaneseq
    %v2512 = vshrl.u32 %v2511, 7
    %v2513 = vsub.s32 %v2510, %v2512
    %v2514 = vrot.slane %v2507, %v2513
    %v2516 = vadd.f32 %v2414, %v2514
    %2517 = vrot.lane.b32.xlu0 %v364, 94
    %v2518 = vpop.permute.xlu0 %2517
    %2519 = vrot.lane.b32.xlu0 %v365, 94
    %v2520 = vpop.permute.xlu0 %2519
    %v2521 = vsel %vm2316, %v2518, %v2520
    %v2522 = vsel %vm2316, %v2520, %v2518
    %s2523 = sld [smem:[#allocation2 + $0x1a]]
    %v2524 = vstv %s2523
    %v2525 = vmul.f32 %v2521, %v2524
    %v2526 = vmul.f32 %v2522, %v2524
    %v2529 = vcombine.low %v2525, %v2526
    %v2531 = vunpack.c.l.s4 1983009808
    %v2532 = vunpack.c.0.s8 %v2531
    %v2533 = vlaneseq
    %v2534 = vshrl.u32 %v2533, 7
    %v2535 = vsub.s32 %v2532, %v2534
    %v2536 = vrot.slane %v2529, %v2535
    %v2538 = vadd.f32 %v2436, %v2536
    %s2539 = sld [smem:[#allocation2 + $0x35]]
    %v2540 = vstv %s2539
    %v2541 = vmul.f32 %v2521, %v2540
    %v2542 = vmul.f32 %v2522, %v2540
    %v2545 = vcombine.low %v2541, %v2542
    %v2547 = vunpack.c.l.s4 1983009808
    %v2548 = vunpack.c.0.s8 %v2547
    %v2549 = vlaneseq
    %v2550 = vshrl.u32 %v2549, 7
    %v2551 = vsub.s32 %v2548, %v2550
    %v2552 = vrot.slane %v2545, %v2551
    %v2554 = vadd.f32 %v2452, %v2552
    %s2555 = sld [smem:[#allocation2 + $0x50]]
    %v2556 = vstv %s2555
    %v2557 = vmul.f32 %v2521, %v2556
    %v2558 = vmul.f32 %v2522, %v2556
    %v2561 = vcombine.low %v2557, %v2558
    %v2563 = vunpack.c.l.s4 1983009808
    %v2564 = vunpack.c.0.s8 %v2563
    %v2565 = vlaneseq
    %v2566 = vshrl.u32 %v2565, 7
    %v2567 = vsub.s32 %v2564, %v2566
    %v2568 = vrot.slane %v2561, %v2567
    %v2570 = vadd.f32 %v2468, %v2568
    %s2571 = sld [smem:[#allocation2 + $0x6b]]
    %v2572 = vstv %s2571
    %v2573 = vmul.f32 %v2521, %v2572
    %v2574 = vmul.f32 %v2522, %v2572
    %v2577 = vcombine.low %v2573, %v2574
    %v2579 = vunpack.c.l.s4 1983009808
    %v2580 = vunpack.c.0.s8 %v2579
    %v2581 = vlaneseq
    %v2582 = vshrl.u32 %v2581, 7
    %v2583 = vsub.s32 %v2580, %v2582
    %v2584 = vrot.slane %v2577, %v2583
    %v2586 = vadd.f32 %v2484, %v2584
    %s2587 = sld [smem:[#allocation2 + $0x86]]
    %v2588 = vstv %s2587
    %v2589 = vmul.f32 %v2521, %v2588
    %v2590 = vmul.f32 %v2522, %v2588
    %v2593 = vcombine.low %v2589, %v2590
    %v2595 = vunpack.c.l.s4 1983009808
    %v2596 = vunpack.c.0.s8 %v2595
    %v2597 = vlaneseq
    %v2598 = vshrl.u32 %v2597, 7
    %v2599 = vsub.s32 %v2596, %v2598
    %v2600 = vrot.slane %v2593, %v2599
    %v2602 = vadd.f32 %v2500, %v2600
    %s2603 = sld [smem:[#allocation2 + $0xa1]]
    %v2604 = vstv %s2603
    %v2605 = vmul.f32 %v2521, %v2604
    %v2606 = vmul.f32 %v2522, %v2604
    %v2609 = vcombine.low %v2605, %v2606
    %v2611 = vunpack.c.l.s4 1983009808
    %v2612 = vunpack.c.0.s8 %v2611
    %v2613 = vlaneseq
    %v2614 = vshrl.u32 %v2613, 7
    %v2615 = vsub.s32 %v2612, %v2614
    %v2616 = vrot.slane %v2609, %v2615
    %v2618 = vadd.f32 %v2516, %v2616
    %2619 = vst [vmem:[%s3] sm:$0xf] %v2538
    %s2620 = scalar_lea.vmem %s3, 4
    %2621 = vst [vmem:[%s2620] sm:$0xf] %v2554
    %s2622 = scalar_lea.vmem %s3, 8
    %2623 = vst [vmem:[%s2622] sm:$0xf] %v2570
    %s2624 = scalar_lea.vmem %s3, 12
    %2625 = vst [vmem:[%s2624] sm:$0xf] %v2586
    %s2626 = scalar_lea.vmem %s3, 16
    %2627 = vst [vmem:[%s2626] sm:$0xf] %v2602
    %s2628 = scalar_lea.vmem %s3, 20
    %2629 = vst [vmem:[%s2628] sm:$0xf] %v2618
    // Predicated region
    $region22: #{li_xiaoning_forward.1} parent=1 // pred_check
      _
    $region23: #{li_xiaoning_forward.1} parent=1 // pred_check_branch
      %2631 = sbr.rel (0) target = $region25
    $region24: #{li_xiaoning_forward.1} parent=1 // pred_region
      _
    $region25: #{li_xiaoning_forward.1} parent=1 // pred_fallthru
      _
    // Predicated region
    $region26: #{li_xiaoning_forward.1} parent=1 // pred_check
      _
    $region27: #{li_xiaoning_forward.1} parent=1 // pred_check_branch
      %2633 = sbr.rel (0) target = $region29
    $region28: #{li_xiaoning_forward.1} parent=1 // pred_region
      _
    $region29: #{li_xiaoning_forward.1} parent=1 // pred_fallthru
      _
    %2634 = vsyncpa [#allocation3], 1
    %2635 = vsyncpa [#allocation5], 1

</llo_original>
